<compile_context>
chip_gen: v6e
topology: v6e:2x2x1
jax: 0.10.0
libtpu: 0.0.40
codegen_flags: <defaults>
</compile_context>

<pallas_src>
import math
import jax
import jax.numpy as jnp
from jax.experimental import pallas as pl
from jax.experimental.pallas import tpu as pltpu


def _group_norm(y, M_div, MT, gamma, beta, eps):
    """GroupNorm on a (nb, P, C) f32 tile, per-image statistics.

    M_div: (C, G) one-hot group membership already divided by (P * C_per_group).
    MT:    (G, C) one-hot transpose.
    gamma/beta: (1, C).
    """
    nb = y.shape[0]
    s1 = jnp.sum(y, axis=1)                                          # (nb, C)
    s2 = jnp.sum(y * y, axis=1)                                      # (nb, C)
    s12 = jnp.concatenate([s1, s2], axis=0)                          # (2*nb, C)
    g12 = jnp.dot(s12, M_div, preferred_element_type=jnp.float32)    # (2*nb, G)
    mean_g = g12[:nb]
    var_g = g12[nb:] - mean_g * mean_g
    inv_g = jax.lax.rsqrt(var_g + eps)
    mi = jnp.concatenate([mean_g, inv_g], axis=0)                    # (2*nb, G)
    c12 = jnp.dot(mi, MT, preferred_element_type=jnp.float32)        # (2*nb, C)
    mean_c = c12[:nb]
    inv_c = c12[nb:]
    scale = inv_c * gamma                                            # (nb, C)
    shift = beta - mean_c * scale                                    # (nb, C)
    return y * scale[:, None, :] + shift[:, None, :]


def make_basic_block_kernel(nb, Ho, Wo, Cin, Cout, eps, has_downsample):
    P = Ho * Wo
    R = nb * P

    def kernel(*refs):
        if has_downsample:
            (x_ref, w1_ref, g1_ref, b1_ref, w2_ref, g2_ref, b2_ref,
             m_ref, mt_ref, gd_ref, bd_ref, out_ref, pad_scr) = refs
        else:
            (x_ref, w1_ref, g1_ref, b1_ref, w2_ref, g2_ref, b2_ref,
             m_ref, mt_ref, out_ref, pad_scr) = refs

        M_div = m_ref[...]
        MT = mt_ref[...]

        # --- conv1 (+ folded 1x1 downsample): single (R, 9*Cin) x (9*Cin, Cout_tot) matmul ---
        patches1 = x_ref[...].reshape(R, 9 * Cin)                    # bf16
        acc = jnp.dot(patches1, w1_ref[...],
                      preferred_element_type=jnp.float32)            # (R, Cout or 2*Cout) f32

        if has_downsample:
            acc1 = acc[:, :Cout].reshape(nb, P, Cout)
            idn = acc[:, Cout:].reshape(nb, P, Cout)
            idn = _group_norm(idn, M_div, MT, gd_ref[...], bd_ref[...], eps)
        else:
            acc1 = acc.reshape(nb, P, Cout)
            # identity branch == center (ki=kj=1) phase of the im2col patches (Cin == Cout)
            idn = patches1[:, 4 * Cin:5 * Cin].astype(jnp.float32).reshape(nb, P, Cout)

        h1 = _group_norm(acc1, M_div, MT, g1_ref[...], b1_ref[...], eps)
        h1 = jnp.maximum(h1, 0.0)

        # --- conv2 (3x3, stride 1): padded VMEM scratch -> (R, 9*Cout) im2col -> one matmul ---
        pad_scr[...] = jnp.zeros_like(pad_scr)
        pad_scr[:, 1:Ho + 1, 1:Wo + 1, :] = h1.reshape(nb, Ho, Wo, Cout)
        wins = []
        for ki in range(3):
            for kj in range(3):
                wins.append(pad_scr[:, ki:ki + Ho, kj:kj + Wo, :].reshape(R, Cout))
        patches2 = jnp.concatenate(wins, axis=-1).astype(jnp.bfloat16)   # (R, 9*Cout)
        acc2 = jnp.dot(patches2, w2_ref[...],
                       preferred_element_type=jnp.float32)               # (R, Cout) f32
        h2 = _group_norm(acc2.reshape(nb, P, Cout), M_div, MT,
                         g2_ref[...], b2_ref[...], eps)

        out = jnp.maximum(h2 + idn, 0.0)                             # (nb, P, Cout)
        out_ref[...] = out

    return kernel


def _images_per_step(N, P, max_rows=1024):
    """Smallest divisor of N whose row count nb*P reaches 128 MXU rows (capped for VMEM)."""
    nb = 1
    for d in range(1, N + 1):
        if N % d == 0 and d * P <= max_rows:
            nb = d
            if d * P >= 128:
                break
    return nb


def basic_block_forward(x_nchw, params, stride, groups=16, eps=1e-5):
    """Pallas implementation of BasicBlock.forward. Input/output are NCHW (like PyTorch)."""
    N, Cin, H, W = x_nchw.shape
    Cout = params["w1"].shape[-1]
    has_ds = (stride != 1) or (Cin != Cout)
    Ho = (H - 1) // stride + 1
    Wo = (W - 1) // stride + 1
    P = Ho * Wo
    Cpg = Cout // groups
    nb = _images_per_step(N, P)

    # glue: NCHW -> NHWC, spatial zero-pad, im2col (N, P, 9*Cin) in bf16 for the MXU.
    # TODO(synk): for large Cin / stride-1 blocks, pass the padded NHWC image instead and
    #             build the im2col in-kernel to avoid the up-to-9x HBM duplication.
    x_nhwc = jnp.transpose(x_nchw, (0, 2, 3, 1)).astype(jnp.float32)
    xpad = jnp.pad(x_nhwc, ((0, 0), (1, 1), (1, 1), (0, 0)))
    cols = []
    for ki in range(3):
        for kj in range(3):
            cols.append(xpad[:, ki:ki + stride * (Ho - 1) + 1:stride,
                                kj:kj + stride * (Wo - 1) + 1:stride, :])
    x_im2col = jnp.concatenate(cols, axis=-1).reshape(N, P, 9 * Cin).astype(jnp.bfloat16)

    # group-membership matrices: M_div = one_hot / (P*Cpg) (folds the mean divide), MT = one_hot.T
    count = float(P * Cpg)
    onehot = (jnp.arange(Cout)[:, None] // Cpg ==
              jnp.arange(groups)[None, :]).astype(jnp.float32)
    M_div = onehot / count
    MT = onehot.T

    # conv weights: HWIO -> (9*Cin, Cout); fold the 1x1 downsample into extra output columns
    # that only see the center-phase rows.
    w1 = params["w1"].reshape(9 * Cin, Cout).astype(jnp.float32)
    if has_ds:
        wd_ext = jnp.zeros((9 * Cin, Cout), jnp.float32)
        wd_ext = wd_ext.at[4 * Cin:5 * Cin, :].set(params["wd"].astype(jnp.float32))
        w1c = jnp.concatenate([w1, wd_ext], axis=1)                  # (9*Cin, 2*Cout)
    else:
        w1c = w1
    w1c = w1c.astype(jnp.bfloat16)
    w2c = params["w2"].reshape(9 * Cout, Cout).astype(jnp.bfloat16)

    g1 = params["g1"].reshape(1, Cout).astype(jnp.float32)
    b1 = params["b1"].reshape(1, Cout).astype(jnp.float32)
    g2 = params["g2"].reshape(1, Cout).astype(jnp.float32)
    b2 = params["b2"].reshape(1, Cout).astype(jnp.float32)

    in_arrays = [x_im2col, w1c, g1, b1, w2c, g2, b2, M_div, MT]
    in_specs = [
        pl.BlockSpec((nb, P, 9 * Cin), lambda n: (n, 0, 0)),
        pl.BlockSpec(tuple(w1c.shape), lambda n: (0, 0)),
        pl.BlockSpec((1, Cout), lambda n: (0, 0)),
        pl.BlockSpec((1, Cout), lambda n: (0, 0)),
        pl.BlockSpec((9 * Cout, Cout), lambda n: (0, 0)),
        pl.BlockSpec((1, Cout), lambda n: (0, 0)),
        pl.BlockSpec((1, Cout), lambda n: (0, 0)),
        pl.BlockSpec((Cout, groups), lambda n: (0, 0)),
        pl.BlockSpec((groups, Cout), lambda n: (0, 0)),
    ]
    if has_ds:
        gd = params["gd"].reshape(1, Cout).astype(jnp.float32)
        bd = params["bd"].reshape(1, Cout).astype(jnp.float32)
        in_arrays += [gd, bd]
        in_specs += [
            pl.BlockSpec((1, Cout), lambda n: (0, 0)),
            pl.BlockSpec((1, Cout), lambda n: (0, 0)),
        ]

    kernel = make_basic_block_kernel(nb, Ho, Wo, Cin, Cout, eps, has_ds)

    out = pl.pallas_call(
        kernel,
        out_shape=jax.ShapeDtypeStruct((N, P, Cout), jnp.float32),
        grid=(N // nb,),
        in_specs=in_specs,
        out_specs=pl.BlockSpec((nb, P, Cout), lambda n: (n, 0, 0)),
        scratch_shapes=[pltpu.VMEM((nb, Ho + 2, Wo + 2, Cout), jnp.float32)],
        compiler_params=pltpu.CompilerParams(dimension_semantics=("parallel",)),
    )(*in_arrays)

    # back to NCHW (reshape/transpose in the wrapper is free XLA-side layout work)
    return jnp.transpose(out.reshape(N, Ho, Wo, Cout), (0, 3, 1, 2))


# ---------------- pure-JAX reference (for verification) ----------------
def _ref_group_norm(y, g, b, groups, eps):
    N, H, W, C = y.shape
    yr = y.reshape(N, H, W, groups, C // groups)
    mean = yr.mean(axis=(1, 2, 4), keepdims=True)
    var = ((yr - mean) ** 2).mean(axis=(1, 2, 4), keepdims=True)
    yn = ((yr - mean) * jax.lax.rsqrt(var + eps)).reshape(N, H, W, C)
    return yn * g + b


def ref_forward(x_nchw, params, stride, groups=16, eps=1e-5):
    x = jnp.transpose(x_nchw, (0, 2, 3, 1)).astype(jnp.float32)
    Cin = x.shape[-1]
    Cout = params["w1"].shape[-1]

    def conv(h, w, s, pad):
        return jax.lax.conv_general_dilated(
            h, w, (s, s), ((pad, pad), (pad, pad)),
            dimension_numbers=("NHWC", "HWIO", "NHWC"))

    h = jax.nn.relu(_ref_group_norm(conv(x, params["w1"], stride, 1),
                                    params["g1"], params["b1"], groups, eps))
    h = _ref_group_norm(conv(h, params["w2"], 1, 1),
                        params["g2"], params["b2"], groups, eps)
    if (stride != 1) or (Cin != Cout):
        idn = _ref_group_norm(conv(x, params["wd"][None, None], stride, 0),
                              params["gd"], params["bd"], groups, eps)
    else:
        idn = x
    out = jax.nn.relu(h + idn)
    return jnp.transpose(out, (0, 3, 1, 2))


if __name__ == "__main__":
    key = jax.random.PRNGKey(0)

    def make_params(k, Cin, Cout, has_ds):
        ks = jax.random.split(k, 9)
        p = {
            "w1": jax.random.normal(ks[0], (3, 3, Cin, Cout), jnp.float32) / math.sqrt(9 * Cin),
            "g1": 1.0 + 0.1 * jax.random.normal(ks[1], (Cout,), jnp.float32),
            "b1": 0.1 * jax.random.normal(ks[2], (Cout,), jnp.float32),
            "w2": jax.random.normal(ks[3], (3, 3, Cout, Cout), jnp.float32) / math.sqrt(9 * Cout),
            "g2": 1.0 + 0.1 * jax.random.normal(ks[4], (Cout,), jnp.float32),
            "b2": 0.1 * jax.random.normal(ks[5], (Cout,), jnp.float32),
        }
        if has_ds:
            p["wd"] = jax.random.normal(ks[6], (Cin, Cout), jnp.float32) / math.sqrt(Cin)
            p["gd"] = 1.0 + 0.1 * jax.random.normal(ks[7], (Cout,), jnp.float32)
            p["bd"] = 0.1 * jax.random.normal(ks[8], (Cout,), jnp.float32)
        return p

    k1, k2, k3, k4 = jax.random.split(key, 4)

    # Case 1: BasicBlock(inplanes=16, planes=32, stride=2) -> downsample branch active.
    N, Cin, H, W, Cout, stride = 2, 16, 16, 16, 32, 2
    x = jax.random.normal(k1, (N, Cin, H, W), jnp.float32)
    params = make_params(k2, Cin, Cout, True)
    out = jax.block_until_ready(basic_block_forward(x, params, stride))
    ref = jax.block_until_ready(ref_forward(x, params, stride))
    assert out.shape == (N, Cout, H // stride, W // stride), out.shape
    max_diff = float(jnp.max(jnp.abs(out - ref)))
    rel = float(jnp.linalg.norm(out - ref) / (jnp.linalg.norm(ref) + 1e-8))
    assert max_diff < 1e-1 and rel < 3e-2, (max_diff, rel)

    # Case 2: BasicBlock(inplanes=32, planes=32, stride=1) -> identity shortcut.
    N, Cin, H, W, Cout, stride = 2, 32, 16, 16, 32, 1
    x = jax.random.normal(k3, (N, Cin, H, W), jnp.float32)
    params = make_params(k4, Cin, Cout, False)
    out = jax.block_until_ready(basic_block_forward(x, params, stride))
    ref = jax.block_until_ready(ref_forward(x, params, stride))
    assert out.shape == (N, Cout, H, W), out.shape
    max_diff = float(jnp.max(jnp.abs(out - ref)))
    rel = float(jnp.linalg.norm(out - ref) / (jnp.linalg.norm(ref) + 1e-8))
    assert max_diff < 1e-1 and rel < 3e-2, (max_diff, rel)

    print("KERNEL_OK")
</pallas_src>

<mosaic_0001>
module attributes {stable_mosaic.version = 11 : i64} {
  func.func @kernel(%arg0: i32, %arg1: memref<2x64x144xbf16, #tpu.memory_space<vmem>>, %arg2: memref<144x64xbf16, #tpu.memory_space<vmem>>, %arg3: memref<1x32xf32, #tpu.memory_space<vmem>>, %arg4: memref<1x32xf32, #tpu.memory_space<vmem>>, %arg5: memref<288x32xbf16, #tpu.memory_space<vmem>>, %arg6: memref<1x32xf32, #tpu.memory_space<vmem>>, %arg7: memref<1x32xf32, #tpu.memory_space<vmem>>, %arg8: memref<32x16xf32, #tpu.memory_space<vmem>>, %arg9: memref<16x32xf32, #tpu.memory_space<vmem>>, %arg10: memref<1x32xf32, #tpu.memory_space<vmem>>, %arg11: memref<1x32xf32, #tpu.memory_space<vmem>>, %arg12: memref<2x64x32xf32, #tpu.memory_space<vmem>>, %arg13: memref<2x10x10x32xf32, #tpu.memory_space<vmem>>) attributes {dimension_semantics = [#tpu.dimension_semantics<parallel>], iteration_bounds = array<i64: 1>, scalar_prefetch = 0 : i64, scratch_operands = 1 : i64, tpu.core_type = #tpu.core_type<tc>, window_params = [{transform_indices = @transform_0, window_bounds = array<i64: 2, 64, 144>}, {pipeline_mode = #tpu.pipeline_mode<synchronous>, transform_indices = @transform_1, window_bounds = array<i64: 144, 64>}, {pipeline_mode = #tpu.pipeline_mode<synchronous>, transform_indices = @transform_2, window_bounds = array<i64: 1, 32>}, {pipeline_mode = #tpu.pipeline_mode<synchronous>, transform_indices = @transform_3, window_bounds = array<i64: 1, 32>}, {pipeline_mode = #tpu.pipeline_mode<synchronous>, transform_indices = @transform_4, window_bounds = array<i64: 288, 32>}, {pipeline_mode = #tpu.pipeline_mode<synchronous>, transform_indices = @transform_5, window_bounds = array<i64: 1, 32>}, {pipeline_mode = #tpu.pipeline_mode<synchronous>, transform_indices = @transform_6, window_bounds = array<i64: 1, 32>}, {pipeline_mode = #tpu.pipeline_mode<synchronous>, transform_indices = @transform_7, window_bounds = array<i64: 32, 16>}, {pipeline_mode = #tpu.pipeline_mode<synchronous>, transform_indices = @transform_8, window_bounds = array<i64: 16, 32>}, {pipeline_mode = #tpu.pipeline_mode<synchronous>, transform_indices = @transform_9, window_bounds = array<i64: 1, 32>}, {pipeline_mode = #tpu.pipeline_mode<synchronous>, transform_indices = @transform_10, window_bounds = array<i64: 1, 32>}, {transform_indices = @transform_11, window_bounds = array<i64: 2, 64, 32>}]} {
    %c0 = arith.constant 0 : index
    %c0_0 = arith.constant 0 : index
    %0 = vector.load %arg8[%c0, %c0_0] : memref<32x16xf32, #tpu.memory_space<vmem>>, vector<32x16xf32>
    %c0_1 = arith.constant 0 : index
    %c0_2 = arith.constant 0 : index
    %1 = vector.load %arg9[%c0_1, %c0_2] : memref<16x32xf32, #tpu.memory_space<vmem>>, vector<16x32xf32>
    %c0_3 = arith.constant 0 : index
    %c0_4 = arith.constant 0 : index
    %c0_5 = arith.constant 0 : index
    %2 = vector.load %arg1[%c0_3, %c0_4, %c0_5] : memref<2x64x144xbf16, #tpu.memory_space<vmem>>, vector<2x64x144xbf16>
    %3 = vector.shape_cast %2 : vector<2x64x144xbf16> to vector<128x144xbf16>
    %c0_6 = arith.constant 0 : index
    %c0_7 = arith.constant 0 : index
    %4 = vector.load %arg2[%c0_6, %c0_7] : memref<144x64xbf16, #tpu.memory_space<vmem>>, vector<144x64xbf16>
    %cst = arith.constant dense<0.000000e+00> : vector<128x64xf32>
    %5 = tpu.matmul %3, %4, %cst {dimension_numbers = #tpu.dot_dimension_numbers<[1], [0], [0], [1], [0, 0, 1, 1], [], []>} : vector<128x144xbf16>, vector<144x64xbf16>, vector<128x64xf32> -> vector<128x64xf32>
    %6 = vector.extract_strided_slice %5 {offsets = [0, 0], sizes = [128, 32], strides = [1, 1]} : vector<128x64xf32> to vector<128x32xf32>
    %7 = vector.shape_cast %6 : vector<128x32xf32> to vector<2x64x32xf32>
    %8 = vector.extract_strided_slice %5 {offsets = [0, 32], sizes = [128, 32], strides = [1, 1]} : vector<128x64xf32> to vector<128x32xf32>
    %9 = vector.shape_cast %8 : vector<128x32xf32> to vector<2x64x32xf32>
    %c0_8 = arith.constant 0 : index
    %c0_9 = arith.constant 0 : index
    %10 = vector.load %arg10[%c0_8, %c0_9] : memref<1x32xf32, #tpu.memory_space<vmem>>, vector<1x32xf32>
    %c0_10 = arith.constant 0 : index
    %c0_11 = arith.constant 0 : index
    %11 = vector.load %arg11[%c0_10, %c0_11] : memref<1x32xf32, #tpu.memory_space<vmem>>, vector<1x32xf32>
    %cst_12 = arith.constant dense<0.000000e+00> : vector<2x32xf32>
    %12 = vector.multi_reduction <add>, %9, %cst_12 [1] : vector<2x64x32xf32> to vector<2x32xf32>
    %13 = arith.mulf %9, %9 : vector<2x64x32xf32>
    %cst_13 = arith.constant dense<0.000000e+00> : vector<2x32xf32>
    %14 = vector.multi_reduction <add>, %13, %cst_13 [1] : vector<2x64x32xf32> to vector<2x32xf32>
    %15 = tpu.concatenate %12, %14 in 0 : vector<2x32xf32>, vector<2x32xf32> -> vector<4x32xf32>
    %cst_14 = arith.constant dense<0.000000e+00> : vector<4x16xf32>
    %16 = tpu.matmul %15, %0, %cst_14 {dimension_numbers = #tpu.dot_dimension_numbers<[1], [0], [0], [1], [0, 0, 1, 1], [], []>} : vector<4x32xf32>, vector<32x16xf32>, vector<4x16xf32> -> vector<4x16xf32>
    %17 = vector.extract_strided_slice %16 {offsets = [0, 0], sizes = [2, 16], strides = [1, 1]} : vector<4x16xf32> to vector<2x16xf32>
    %18 = vector.extract_strided_slice %16 {offsets = [2, 0], sizes = [2, 16], strides = [1, 1]} : vector<4x16xf32> to vector<2x16xf32>
    %19 = arith.mulf %17, %17 : vector<2x16xf32>
    %20 = arith.subf %18, %19 : vector<2x16xf32>
    %cst_15 = arith.constant 9.99999974E-6 : f32
    %21 = vector.broadcast %cst_15 : f32 to vector<2x16xf32>
    %22 = arith.addf %20, %21 : vector<2x16xf32>
    %23 = math.rsqrt %22 : vector<2x16xf32>
    %24 = tpu.concatenate %17, %23 in 0 : vector<2x16xf32>, vector<2x16xf32> -> vector<4x16xf32>
    %cst_16 = arith.constant dense<0.000000e+00> : vector<4x32xf32>
    %25 = tpu.matmul %24, %1, %cst_16 {dimension_numbers = #tpu.dot_dimension_numbers<[1], [0], [0], [1], [0, 0, 1, 1], [], []>} : vector<4x16xf32>, vector<16x32xf32>, vector<4x32xf32> -> vector<4x32xf32>
    %26 = vector.extract_strided_slice %25 {offsets = [0, 0], sizes = [2, 32], strides = [1, 1]} : vector<4x32xf32> to vector<2x32xf32>
    %27 = vector.extract_strided_slice %25 {offsets = [2, 0], sizes = [2, 32], strides = [1, 1]} : vector<4x32xf32> to vector<2x32xf32>
    %28 = vector.broadcast %10 : vector<1x32xf32> to vector<2x32xf32>
    %29 = arith.mulf %27, %28 : vector<2x32xf32>
    %30 = arith.mulf %26, %29 : vector<2x32xf32>
    %31 = vector.broadcast %11 : vector<1x32xf32> to vector<2x32xf32>
    %32 = arith.subf %31, %30 : vector<2x32xf32>
    %33 = vector.shape_cast %29 : vector<2x32xf32> to vector<2x1x32xf32>
    %34 = vector.broadcast %33 : vector<2x1x32xf32> to vector<2x64x32xf32>
    %35 = arith.mulf %9, %34 : vector<2x64x32xf32>
    %36 = vector.shape_cast %32 : vector<2x32xf32> to vector<2x1x32xf32>
    %37 = vector.broadcast %36 : vector<2x1x32xf32> to vector<2x64x32xf32>
    %38 = arith.addf %35, %37 : vector<2x64x32xf32>
    %c0_17 = arith.constant 0 : index
    %c0_18 = arith.constant 0 : index
    %39 = vector.load %arg3[%c0_17, %c0_18] : memref<1x32xf32, #tpu.memory_space<vmem>>, vector<1x32xf32>
    %c0_19 = arith.constant 0 : index
    %c0_20 = arith.constant 0 : index
    %40 = vector.load %arg4[%c0_19, %c0_20] : memref<1x32xf32, #tpu.memory_space<vmem>>, vector<1x32xf32>
    %cst_21 = arith.constant dense<0.000000e+00> : vector<2x32xf32>
    %41 = vector.multi_reduction <add>, %7, %cst_21 [1] : vector<2x64x32xf32> to vector<2x32xf32>
    %42 = arith.mulf %7, %7 : vector<2x64x32xf32>
    %cst_22 = arith.constant dense<0.000000e+00> : vector<2x32xf32>
    %43 = vector.multi_reduction <add>, %42, %cst_22 [1] : vector<2x64x32xf32> to vector<2x32xf32>
    %44 = tpu.concatenate %41, %43 in 0 : vector<2x32xf32>, vector<2x32xf32> -> vector<4x32xf32>
    %cst_23 = arith.constant dense<0.000000e+00> : vector<4x16xf32>
    %45 = tpu.matmul %44, %0, %cst_23 {dimension_numbers = #tpu.dot_dimension_numbers<[1], [0], [0], [1], [0, 0, 1, 1], [], []>} : vector<4x32xf32>, vector<32x16xf32>, vector<4x16xf32> -> vector<4x16xf32>
    %46 = vector.extract_strided_slice %45 {offsets = [0, 0], sizes = [2, 16], strides = [1, 1]} : vector<4x16xf32> to vector<2x16xf32>
    %47 = vector.extract_strided_slice %45 {offsets = [2, 0], sizes = [2, 16], strides = [1, 1]} : vector<4x16xf32> to vector<2x16xf32>
    %48 = arith.mulf %46, %46 : vector<2x16xf32>
    %49 = arith.subf %47, %48 : vector<2x16xf32>
    %cst_24 = arith.constant 9.99999974E-6 : f32
    %50 = vector.broadcast %cst_24 : f32 to vector<2x16xf32>
    %51 = arith.addf %49, %50 : vector<2x16xf32>
    %52 = math.rsqrt %51 : vector<2x16xf32>
    %53 = tpu.concatenate %46, %52 in 0 : vector<2x16xf32>, vector<2x16xf32> -> vector<4x16xf32>
    %cst_25 = arith.constant dense<0.000000e+00> : vector<4x32xf32>
    %54 = tpu.matmul %53, %1, %cst_25 {dimension_numbers = #tpu.dot_dimension_numbers<[1], [0], [0], [1], [0, 0, 1, 1], [], []>} : vector<4x16xf32>, vector<16x32xf32>, vector<4x32xf32> -> vector<4x32xf32>
    %55 = vector.extract_strided_slice %54 {offsets = [0, 0], sizes = [2, 32], strides = [1, 1]} : vector<4x32xf32> to vector<2x32xf32>
    %56 = vector.extract_strided_slice %54 {offsets = [2, 0], sizes = [2, 32], strides = [1, 1]} : vector<4x32xf32> to vector<2x32xf32>
    %57 = vector.broadcast %39 : vector<1x32xf32> to vector<2x32xf32>
    %58 = arith.mulf %56, %57 : vector<2x32xf32>
    %59 = arith.mulf %55, %58 : vector<2x32xf32>
    %60 = vector.broadcast %40 : vector<1x32xf32> to vector<2x32xf32>
    %61 = arith.subf %60, %59 : vector<2x32xf32>
    %62 = vector.shape_cast %58 : vector<2x32xf32> to vector<2x1x32xf32>
    %63 = vector.broadcast %62 : vector<2x1x32xf32> to vector<2x64x32xf32>
    %64 = arith.mulf %7, %63 : vector<2x64x32xf32>
    %65 = vector.shape_cast %61 : vector<2x32xf32> to vector<2x1x32xf32>
    %66 = vector.broadcast %65 : vector<2x1x32xf32> to vector<2x64x32xf32>
    %67 = arith.addf %64, %66 : vector<2x64x32xf32>
    %cst_26 = arith.constant 0.000000e+00 : f32
    %68 = vector.broadcast %cst_26 : f32 to vector<2x64x32xf32>
    %69 = arith.maximumf %67, %68 : vector<2x64x32xf32>
    %cst_27 = arith.constant 0.000000e+00 : f32
    %70 = vector.broadcast %cst_27 : f32 to vector<2x10x10x32xf32>
    %c0_28 = arith.constant 0 : index
    %c0_29 = arith.constant 0 : index
    %c0_30 = arith.constant 0 : index
    %c0_31 = arith.constant 0 : index
    %71 = vector.load %arg13[%c0_28, %c0_29, %c0_30, %c0_31] : memref<2x10x10x32xf32, #tpu.memory_space<vmem>>, vector<2x10x10x32xf32>
    tpu.vector_store %arg13[%c0_28, %c0_29, %c0_30, %c0_31], %70 {strides = array<i32>} : memref<2x10x10x32xf32, #tpu.memory_space<vmem>>, vector<2x10x10x32xf32>,
    %72 = vector.shape_cast %69 : vector<2x64x32xf32> to vector<2x8x8x32xf32>
    %c0_32 = arith.constant 0 : index
    %c1 = arith.constant 1 : index
    %c1_33 = arith.constant 1 : index
    %c0_34 = arith.constant 0 : index
    %73 = vector.load %arg13[%c0_32, %c1, %c1_33, %c0_34] : memref<2x10x10x32xf32, #tpu.memory_space<vmem>>, vector<2x8x8x32xf32>
    tpu.vector_store %arg13[%c0_32, %c1, %c1_33, %c0_34], %72 {strides = array<i32>} : memref<2x10x10x32xf32, #tpu.memory_space<vmem>>, vector<2x8x8x32xf32>,
    %c0_35 = arith.constant 0 : index
    %c0_36 = arith.constant 0 : index
    %c0_37 = arith.constant 0 : index
    %c0_38 = arith.constant 0 : index
    %74 = vector.load %arg13[%c0_35, %c0_36, %c0_37, %c0_38] : memref<2x10x10x32xf32, #tpu.memory_space<vmem>>, vector<2x8x8x32xf32>
    %75 = vector.shape_cast %74 : vector<2x8x8x32xf32> to vector<128x32xf32>
    %c0_39 = arith.constant 0 : index
    %c0_40 = arith.constant 0 : index
    %c1_41 = arith.constant 1 : index
    %c0_42 = arith.constant 0 : index
    %76 = vector.load %arg13[%c0_39, %c0_40, %c1_41, %c0_42] : memref<2x10x10x32xf32, #tpu.memory_space<vmem>>, vector<2x8x8x32xf32>
    %77 = vector.shape_cast %76 : vector<2x8x8x32xf32> to vector<128x32xf32>
    %c0_43 = arith.constant 0 : index
    %c0_44 = arith.constant 0 : index
    %c2 = arith.constant 2 : index
    %c0_45 = arith.constant 0 : index
    %78 = vector.load %arg13[%c0_43, %c0_44, %c2, %c0_45] : memref<2x10x10x32xf32, #tpu.memory_space<vmem>>, vector<2x8x8x32xf32>
    %79 = vector.shape_cast %78 : vector<2x8x8x32xf32> to vector<128x32xf32>
    %c0_46 = arith.constant 0 : index
    %c1_47 = arith.constant 1 : index
    %c0_48 = arith.constant 0 : index
    %c0_49 = arith.constant 0 : index
    %80 = vector.load %arg13[%c0_46, %c1_47, %c0_48, %c0_49] : memref<2x10x10x32xf32, #tpu.memory_space<vmem>>, vector<2x8x8x32xf32>
    %81 = vector.shape_cast %80 : vector<2x8x8x32xf32> to vector<128x32xf32>
    %c0_50 = arith.constant 0 : index
    %c1_51 = arith.constant 1 : index
    %c1_52 = arith.constant 1 : index
    %c0_53 = arith.constant 0 : index
    %82 = vector.load %arg13[%c0_50, %c1_51, %c1_52, %c0_53] : memref<2x10x10x32xf32, #tpu.memory_space<vmem>>, vector<2x8x8x32xf32>
    %83 = vector.shape_cast %82 : vector<2x8x8x32xf32> to vector<128x32xf32>
    %c0_54 = arith.constant 0 : index
    %c1_55 = arith.constant 1 : index
    %c2_56 = arith.constant 2 : index
    %c0_57 = arith.constant 0 : index
    %84 = vector.load %arg13[%c0_54, %c1_55, %c2_56, %c0_57] : memref<2x10x10x32xf32, #tpu.memory_space<vmem>>, vector<2x8x8x32xf32>
    %85 = vector.shape_cast %84 : vector<2x8x8x32xf32> to vector<128x32xf32>
    %c0_58 = arith.constant 0 : index
    %c2_59 = arith.constant 2 : index
    %c0_60 = arith.constant 0 : index
    %c0_61 = arith.constant 0 : index
    %86 = vector.load %arg13[%c0_58, %c2_59, %c0_60, %c0_61] : memref<2x10x10x32xf32, #tpu.memory_space<vmem>>, vector<2x8x8x32xf32>
    %87 = vector.shape_cast %86 : vector<2x8x8x32xf32> to vector<128x32xf32>
    %c0_62 = arith.constant 0 : index
    %c2_63 = arith.constant 2 : index
    %c1_64 = arith.constant 1 : index
    %c0_65 = arith.constant 0 : index
    %88 = vector.load %arg13[%c0_62, %c2_63, %c1_64, %c0_65] : memref<2x10x10x32xf32, #tpu.memory_space<vmem>>, vector<2x8x8x32xf32>
    %89 = vector.shape_cast %88 : vector<2x8x8x32xf32> to vector<128x32xf32>
    %c0_66 = arith.constant 0 : index
    %c2_67 = arith.constant 2 : index
    %c2_68 = arith.constant 2 : index
    %c0_69 = arith.constant 0 : index
    %90 = vector.load %arg13[%c0_66, %c2_67, %c2_68, %c0_69] : memref<2x10x10x32xf32, #tpu.memory_space<vmem>>, vector<2x8x8x32xf32>
    %91 = vector.shape_cast %90 : vector<2x8x8x32xf32> to vector<128x32xf32>
    %92 = tpu.concatenate %75, %77, %79, %81, %83, %85, %87, %89, %91 in 1 : vector<128x32xf32>, vector<128x32xf32>, vector<128x32xf32>, vector<128x32xf32>, vector<128x32xf32>, vector<128x32xf32>, vector<128x32xf32>, vector<128x32xf32>, vector<128x32xf32> -> vector<128x288xf32>
    %93 = arith.truncf %92 : vector<128x288xf32> to vector<128x288xbf16>
    %c0_70 = arith.constant 0 : index
    %c0_71 = arith.constant 0 : index
    %94 = vector.load %arg5[%c0_70, %c0_71] : memref<288x32xbf16, #tpu.memory_space<vmem>>, vector<288x32xbf16>
    %cst_72 = arith.constant dense<0.000000e+00> : vector<128x32xf32>
    %95 = tpu.matmul %93, %94, %cst_72 {dimension_numbers = #tpu.dot_dimension_numbers<[1], [0], [0], [1], [0, 0, 1, 1], [], []>} : vector<128x288xbf16>, vector<288x32xbf16>, vector<128x32xf32> -> vector<128x32xf32>
    %96 = vector.shape_cast %95 : vector<128x32xf32> to vector<2x64x32xf32>
    %c0_73 = arith.constant 0 : index
    %c0_74 = arith.constant 0 : index
    %97 = vector.load %arg6[%c0_73, %c0_74] : memref<1x32xf32, #tpu.memory_space<vmem>>, vector<1x32xf32>
    %c0_75 = arith.constant 0 : index
    %c0_76 = arith.constant 0 : index
    %98 = vector.load %arg7[%c0_75, %c0_76] : memref<1x32xf32, #tpu.memory_space<vmem>>, vector<1x32xf32>
    %cst_77 = arith.constant dense<0.000000e+00> : vector<2x32xf32>
    %99 = vector.multi_reduction <add>, %96, %cst_77 [1] : vector<2x64x32xf32> to vector<2x32xf32>
    %100 = arith.mulf %96, %96 : vector<2x64x32xf32>
    %cst_78 = arith.constant dense<0.000000e+00> : vector<2x32xf32>
    %101 = vector.multi_reduction <add>, %100, %cst_78 [1] : vector<2x64x32xf32> to vector<2x32xf32>
    %102 = tpu.concatenate %99, %101 in 0 : vector<2x32xf32>, vector<2x32xf32> -> vector<4x32xf32>
    %cst_79 = arith.constant dense<0.000000e+00> : vector<4x16xf32>
    %103 = tpu.matmul %102, %0, %cst_79 {dimension_numbers = #tpu.dot_dimension_numbers<[1], [0], [0], [1], [0, 0, 1, 1], [], []>} : vector<4x32xf32>, vector<32x16xf32>, vector<4x16xf32> -> vector<4x16xf32>
    %104 = vector.extract_strided_slice %103 {offsets = [0, 0], sizes = [2, 16], strides = [1, 1]} : vector<4x16xf32> to vector<2x16xf32>
    %105 = vector.extract_strided_slice %103 {offsets = [2, 0], sizes = [2, 16], strides = [1, 1]} : vector<4x16xf32> to vector<2x16xf32>
    %106 = arith.mulf %104, %104 : vector<2x16xf32>
    %107 = arith.subf %105, %106 : vector<2x16xf32>
    %cst_80 = arith.constant 9.99999974E-6 : f32
    %108 = vector.broadcast %cst_80 : f32 to vector<2x16xf32>
    %109 = arith.addf %107, %108 : vector<2x16xf32>
    %110 = math.rsqrt %109 : vector<2x16xf32>
    %111 = tpu.concatenate %104, %110 in 0 : vector<2x16xf32>, vector<2x16xf32> -> vector<4x16xf32>
    %cst_81 = arith.constant dense<0.000000e+00> : vector<4x32xf32>
    %112 = tpu.matmul %111, %1, %cst_81 {dimension_numbers = #tpu.dot_dimension_numbers<[1], [0], [0], [1], [0, 0, 1, 1], [], []>} : vector<4x16xf32>, vector<16x32xf32>, vector<4x32xf32> -> vector<4x32xf32>
    %113 = vector.extract_strided_slice %112 {offsets = [0, 0], sizes = [2, 32], strides = [1, 1]} : vector<4x32xf32> to vector<2x32xf32>
    %114 = vector.extract_strided_slice %112 {offsets = [2, 0], sizes = [2, 32], strides = [1, 1]} : vector<4x32xf32> to vector<2x32xf32>
    %115 = vector.broadcast %97 : vector<1x32xf32> to vector<2x32xf32>
    %116 = arith.mulf %114, %115 : vector<2x32xf32>
    %117 = arith.mulf %113, %116 : vector<2x32xf32>
    %118 = vector.broadcast %98 : vector<1x32xf32> to vector<2x32xf32>
    %119 = arith.subf %118, %117 : vector<2x32xf32>
    %120 = vector.shape_cast %116 : vector<2x32xf32> to vector<2x1x32xf32>
    %121 = vector.broadcast %120 : vector<2x1x32xf32> to vector<2x64x32xf32>
    %122 = arith.mulf %96, %121 : vector<2x64x32xf32>
    %123 = vector.shape_cast %119 : vector<2x32xf32> to vector<2x1x32xf32>
    %124 = vector.broadcast %123 : vector<2x1x32xf32> to vector<2x64x32xf32>
    %125 = arith.addf %122, %124 : vector<2x64x32xf32>
    %126 = arith.addf %125, %38 : vector<2x64x32xf32>
    %cst_82 = arith.constant 0.000000e+00 : f32
    %127 = vector.broadcast %cst_82 : f32 to vector<2x64x32xf32>
    %128 = arith.maximumf %126, %127 : vector<2x64x32xf32>
    %c0_83 = arith.constant 0 : index
    %c0_84 = arith.constant 0 : index
    %c0_85 = arith.constant 0 : index
    %129 = vector.load %arg12[%c0_83, %c0_84, %c0_85] : memref<2x64x32xf32, #tpu.memory_space<vmem>>, vector<2x64x32xf32>
    tpu.vector_store %arg12[%c0_83, %c0_84, %c0_85], %128 {strides = array<i32>} : memref<2x64x32xf32, #tpu.memory_space<vmem>>, vector<2x64x32xf32>,
    return
  }
  func.func @transform_0(%arg0: i32) -> (i32, i32, i32) {
    %c0_i32 = arith.constant 0 : i32
    %c0_i32_0 = arith.constant 0 : i32
    %c0_i32_1 = arith.constant 0 : i32
    return %arg0, %c0_i32, %c0_i32_0 : i32, i32, i32
  }
  func.func @transform_1(%arg0: i32) -> (i32, i32) {
    %c0_i32 = arith.constant 0 : i32
    %c0_i32_0 = arith.constant 0 : i32
    %c0_i32_1 = arith.constant 0 : i32
    return %c0_i32, %c0_i32_0 : i32, i32
  }
  func.func @transform_2(%arg0: i32) -> (i32, i32) {
    %c0_i32 = arith.constant 0 : i32
    %c0_i32_0 = arith.constant 0 : i32
    %c0_i32_1 = arith.constant 0 : i32
    return %c0_i32, %c0_i32_0 : i32, i32
  }
  func.func @transform_3(%arg0: i32) -> (i32, i32) {
    %c0_i32 = arith.constant 0 : i32
    %c0_i32_0 = arith.constant 0 : i32
    %c0_i32_1 = arith.constant 0 : i32
    return %c0_i32, %c0_i32_0 : i32, i32
  }
  func.func @transform_4(%arg0: i32) -> (i32, i32) {
    %c0_i32 = arith.constant 0 : i32
    %c0_i32_0 = arith.constant 0 : i32
    %c0_i32_1 = arith.constant 0 : i32
    return %c0_i32, %c0_i32_0 : i32, i32
  }
  func.func @transform_5(%arg0: i32) -> (i32, i32) {
    %c0_i32 = arith.constant 0 : i32
    %c0_i32_0 = arith.constant 0 : i32
    %c0_i32_1 = arith.constant 0 : i32
    return %c0_i32, %c0_i32_0 : i32, i32
  }
  func.func @transform_6(%arg0: i32) -> (i32, i32) {
    %c0_i32 = arith.constant 0 : i32
    %c0_i32_0 = arith.constant 0 : i32
    %c0_i32_1 = arith.constant 0 : i32
    return %c0_i32, %c0_i32_0 : i32, i32
  }
  func.func @transform_7(%arg0: i32) -> (i32, i32) {
    %c0_i32 = arith.constant 0 : i32
    %c0_i32_0 = arith.constant 0 : i32
    %c0_i32_1 = arith.constant 0 : i32
    return %c0_i32, %c0_i32_0 : i32, i32
  }
  func.func @transform_8(%arg0: i32) -> (i32, i32) {
    %c0_i32 = arith.constant 0 : i32
    %c0_i32_0 = arith.constant 0 : i32
    %c0_i32_1 = arith.constant 0 : i32
    return %c0_i32, %c0_i32_0 : i32, i32
  }
  func.func @transform_9(%arg0: i32) -> (i32, i32) {
    %c0_i32 = arith.constant 0 : i32
    %c0_i32_0 = arith.constant 0 : i32
    %c0_i32_1 = arith.constant 0 : i32
    return %c0_i32, %c0_i32_0 : i32, i32
  }
  func.func @transform_10(%arg0: i32) -> (i32, i32) {
    %c0_i32 = arith.constant 0 : i32
    %c0_i32_0 = arith.constant 0 : i32
    %c0_i32_1 = arith.constant 0 : i32
    return %c0_i32, %c0_i32_0 : i32, i32
  }
  func.func @transform_11(%arg0: i32) -> (i32, i32, i32) {
    %c0_i32 = arith.constant 0 : i32
    %c0_i32_0 = arith.constant 0 : i32
    %c0_i32_1 = arith.constant 0 : i32
    return %arg0, %c0_i32, %c0_i32_0 : i32, i32, i32
  }
}

</mosaic_0001>

<llo_original>
// kernel: tpu_custom_call.1
$region0: #{tpu_custom_call.1}
  #allocation0 [shape = 'u32[]', space=smem, size = 0x4, offset = 0x4, fixed_abs, tag = 'smem constant byte address 0x4 - core index']
  #allocation1 [shape = 'u32[144,128]{1,0:T(1,128)}', space=vmem, size = 0x12000, scoped, tag = 'internal scratch']
  #allocation2 [shape = 'f32[2,10,10,32]{3,2,1,0:T(8,128)}', space=vmem, size = 0x28000, scoped, tag = 'scratch operand']
  %s0 = inlined_call_operand.vmem [shape: bf16[2,64,144], index: 0, kind: input, shape index: {}]
  %s1 = inlined_call_operand.vmem [shape: bf16[144,64], index: 1, kind: input, shape index: {}]
  %s2 = inlined_call_operand.vmem [shape: f32[1,32], index: 2, kind: input, shape index: {}]
  %s3 = inlined_call_operand.vmem [shape: f32[1,32], index: 3, kind: input, shape index: {}]
  %s4 = inlined_call_operand.vmem [shape: bf16[288,32], index: 4, kind: input, shape index: {}]
  %s5 = inlined_call_operand.vmem [shape: f32[1,32], index: 5, kind: input, shape index: {}]
  %s6 = inlined_call_operand.vmem [shape: f32[1,32], index: 6, kind: input, shape index: {}]
  %s7 = inlined_call_operand.vmem [shape: f32[32,16], index: 7, kind: input, shape index: {}]
  %s8 = inlined_call_operand.vmem [shape: f32[16,32], index: 8, kind: input, shape index: {}]
  %s9 = inlined_call_operand.vmem [shape: f32[1,32], index: 9, kind: input, shape index: {}]
  %s10 = inlined_call_operand.vmem [shape: f32[1,32], index: 10, kind: input, shape index: {}]
  %s11 = inlined_call_operand.vmem [shape: f32[2,64,32], index: 11, kind: output, shape index: {}]
  %s12 = sld [smem:[#allocation0]]
  $region54: #{tpu_custom_call.1} parent=0
    _
  %s14 = ssub.s32 1, %s12
  %s15 = scalar_select 0, %s14, %s12
  // Predicated region
  $region2: #{tpu_custom_call.1} parent=0 // pred_check
    _
  $region3: #{tpu_custom_call.1} parent=0 // pred_check_branch
    %17 = sbr.rel (0) target = $region5
  $region4: #{tpu_custom_call.1} parent=0 // pred_region
    _
  $region5: #{tpu_custom_call.1} parent=0 // pred_fallthru
    _
  // Predicated region
  $region6: #{tpu_custom_call.1} parent=0 // pred_check
    _
  $region7: #{tpu_custom_call.1} parent=0 // pred_check_branch
    %19 = sbr.rel (0) target = $region9
  $region8: #{tpu_custom_call.1} parent=0 // pred_region
    _
  $region9: #{tpu_custom_call.1} parent=0 // pred_fallthru
    _
  // Predicated region
  $region10: #{tpu_custom_call.1} parent=0 // pred_check
    _
  $region11: #{tpu_custom_call.1} parent=0 // pred_check_branch
    %21 = sbr.rel (0) target = $region13
  $region12: #{tpu_custom_call.1} parent=0 // pred_region
    _
  $region13: #{tpu_custom_call.1} parent=0 // pred_fallthru
    _
  // Predicated region
  $region14: #{tpu_custom_call.1} parent=0 // pred_check
    _
  $region15: #{tpu_custom_call.1} parent=0 // pred_check_branch
    %23 = sbr.rel (0) target = $region17
  $region16: #{tpu_custom_call.1} parent=0 // pred_region
    _
  $region17: #{tpu_custom_call.1} parent=0 // pred_fallthru
    _
  // Predicated region
  $region18: #{tpu_custom_call.1} parent=0 // pred_check
    _
  $region19: #{tpu_custom_call.1} parent=0 // pred_check_branch
    %25 = sbr.rel (0) target = $region21
  $region20: #{tpu_custom_call.1} parent=0 // pred_region
    _
  $region21: #{tpu_custom_call.1} parent=0 // pred_fallthru
    _
  // Predicated region
  $region22: #{tpu_custom_call.1} parent=0 // pred_check
    _
  $region23: #{tpu_custom_call.1} parent=0 // pred_check_branch
    %27 = sbr.rel (0) target = $region25
  $region24: #{tpu_custom_call.1} parent=0 // pred_region
    _
  $region25: #{tpu_custom_call.1} parent=0 // pred_fallthru
    _
  // Predicated region
  $region26: #{tpu_custom_call.1} parent=0 // pred_check
    _
  $region27: #{tpu_custom_call.1} parent=0 // pred_check_branch
    %29 = sbr.rel (0) target = $region29
  $region28: #{tpu_custom_call.1} parent=0 // pred_region
    _
  $region29: #{tpu_custom_call.1} parent=0 // pred_fallthru
    _
  // Predicated region
  $region30: #{tpu_custom_call.1} parent=0 // pred_check
    _
  $region31: #{tpu_custom_call.1} parent=0 // pred_check_branch
    %31 = sbr.rel (0) target = $region33
  $region32: #{tpu_custom_call.1} parent=0 // pred_region
    _
  $region33: #{tpu_custom_call.1} parent=0 // pred_fallthru
    _
  // Predicated region
  $region34: #{tpu_custom_call.1} parent=0 // pred_check
    _
  $region35: #{tpu_custom_call.1} parent=0 // pred_check_branch
    %33 = sbr.rel (0) target = $region37
  $region36: #{tpu_custom_call.1} parent=0 // pred_region
    _
  $region37: #{tpu_custom_call.1} parent=0 // pred_fallthru
    _
  // Predicated region
  $region38: #{tpu_custom_call.1} parent=0 // pred_check
    _
  $region39: #{tpu_custom_call.1} parent=0 // pred_check_branch
    %35 = sbr.rel (0) target = $region41
  $region40: #{tpu_custom_call.1} parent=0 // pred_region
    _
  $region41: #{tpu_custom_call.1} parent=0 // pred_fallthru
    _
  // Predicated region
  $region42: #{tpu_custom_call.1} parent=0 // pred_check
    _
  $region43: #{tpu_custom_call.1} parent=0 // pred_check_branch
    %37 = sbr.rel (0) target = $region45
  $region44: #{tpu_custom_call.1} parent=0 // pred_region
    _
  $region45: #{tpu_custom_call.1} parent=0 // pred_fallthru
    _
  %v39 = vld [vmem:[%s7] sm:$0xff]
  %v40 = vld [vmem:[%s7 + $0x8] sm:$0xff]
  %v41 = vld [vmem:[%s7 + $0x10] sm:$0xff]
  %v42 = vld [vmem:[%s7 + $0x18] sm:$0xff]
  %v43 = vld [vmem:[%s8] sm:$0xff]
  %v44 = vld [vmem:[%s8 + $0x8] sm:$0xff]
  %v45 = vld [vmem:[%s0] sm:$0xff]
  %v46 = vld [vmem:[%s0 + $0x8] sm:$0xff]
  %v47 = vld [vmem:[%s0 + $0x10] sm:$0xff]
  %v48 = vld [vmem:[%s0 + $0x18] sm:$0xff]
  %v49 = vld [vmem:[%s0 + $0x20] sm:$0xff]
  %v50 = vld [vmem:[%s0 + $0x28] sm:$0xff]
  %v51 = vld [vmem:[%s0 + $0x30] sm:$0xff]
  %v52 = vld [vmem:[%s0 + $0x38] sm:$0xff]
  %v53 = vld [vmem:[%s0 + $0x40] sm:$0xff]
  %v54 = vld [vmem:[%s0 + $0x48] sm:$0xff]
  %v55 = vld [vmem:[%s0 + $0x50] sm:$0xff]
  %v56 = vld [vmem:[%s0 + $0x58] sm:$0xff]
  %v57 = vld [vmem:[%s0 + $0x60] sm:$0xff]
  %v58 = vld [vmem:[%s0 + $0x68] sm:$0xff]
  %v59 = vld [vmem:[%s0 + $0x70] sm:$0xff]
  %v60 = vld [vmem:[%s0 + $0x78] sm:$0xff]
  %v61 = vld [vmem:[%s1] sm:$0xf]
  %v62 = vld [vmem:[%s1 + $0x4] sm:$0xf]
  %v63 = vld [vmem:[%s1 + $0x8] sm:$0xf]
  %v64 = vld [vmem:[%s1 + $0xc] sm:$0xf]
  %v65 = vld [vmem:[%s1 + $0x10] sm:$0xf]
  %v66 = vld [vmem:[%s1 + $0x14] sm:$0xf]
  %v67 = vld [vmem:[%s1 + $0x18] sm:$0xf]
  %v68 = vld [vmem:[%s1 + $0x1c] sm:$0xf]
  %v69 = vld [vmem:[%s1 + $0x20] sm:$0xf]
  %v70 = vld [vmem:[%s1 + $0x24] sm:$0xf]
  %v71 = vld [vmem:[%s1 + $0x28] sm:$0xf]
  %v72 = vld [vmem:[%s1 + $0x2c] sm:$0xf]
  %v73 = vld [vmem:[%s1 + $0x30] sm:$0xf]
  %v74 = vld [vmem:[%s1 + $0x34] sm:$0xf]
  %v75 = vld [vmem:[%s1 + $0x38] sm:$0xf]
  %v76 = vld [vmem:[%s1 + $0x3c] sm:$0xf]
  %v77 = vld [vmem:[%s1 + $0x40] sm:$0xf]
  %v78 = vld [vmem:[%s1 + $0x44] sm:$0xf]
  %v95 = vunpack.c.l.b16 %v45
  %v96 = vunpack.c.h.b16 %v45
  %v97 = vunpack.c.l.b16 %v46
  %v98 = vunpack.c.h.b16 %v46
  %v99 = vunpack.c.l.b16 %v47
  %v100 = vunpack.c.h.b16 %v47
  %v101 = vunpack.c.l.b16 %v48
  %v102 = vunpack.c.h.b16 %v48
  %v103 = vunpack.c.l.b16 %v49
  %v104 = vunpack.c.h.b16 %v49
  %v105 = vunpack.c.l.b16 %v50
  %v106 = vunpack.c.h.b16 %v50
  %v107 = vunpack.c.l.b16 %v51
  %v108 = vunpack.c.h.b16 %v51
  %v109 = vunpack.c.l.b16 %v52
  %v110 = vunpack.c.h.b16 %v52
  %v111 = vunpack.c.l.b16 %v53
  %v112 = vunpack.c.h.b16 %v53
  %v113 = vunpack.c.l.b16 %v54
  %v114 = vunpack.c.h.b16 %v54
  %v115 = vunpack.c.l.b16 %v55
  %v116 = vunpack.c.h.b16 %v55
  %v117 = vunpack.c.l.b16 %v56
  %v118 = vunpack.c.h.b16 %v56
  %v119 = vunpack.c.l.b16 %v57
  %v120 = vunpack.c.h.b16 %v57
  %v121 = vunpack.c.l.b16 %v58
  %v122 = vunpack.c.h.b16 %v58
  %v123 = vunpack.c.l.b16 %v59
  %v124 = vunpack.c.h.b16 %v59
  %v125 = vunpack.c.l.b16 %v60
  %v126 = vunpack.c.h.b16 %v60
  %v127 = vpack.c.b16 %v97, %v95
  %v128 = vpack.c.b16 %v98, %v96
  %v129 = vpack.c.b16 %v101, %v99
  %v130 = vpack.c.b16 %v102, %v100
  %v131 = vpack.c.b16 %v105, %v103
  %v132 = vpack.c.b16 %v106, %v104
  %v133 = vpack.c.b16 %v109, %v107
  %v134 = vpack.c.b16 %v110, %v108
  %v135 = vpack.c.b16 %v113, %v111
  %v136 = vpack.c.b16 %v114, %v112
  %v137 = vpack.c.b16 %v117, %v115
  %v138 = vpack.c.b16 %v118, %v116
  %v139 = vpack.c.b16 %v121, %v119
  %v140 = vpack.c.b16 %v122, %v120
  %v141 = vpack.c.b16 %v125, %v123
  %v142 = vpack.c.b16 %v126, %v124
  %v169 = vunpack.c.l.b16 %v61
  %v170 = vunpack.c.l.b16 %v62
  %v171 = vunpack.c.l.b16 %v63
  %v172 = vunpack.c.l.b16 %v64
  %v173 = vunpack.c.l.b16 %v65
  %v174 = vunpack.c.l.b16 %v66
  %v175 = vunpack.c.l.b16 %v67
  %v176 = vunpack.c.l.b16 %v68
  %v177 = vunpack.c.l.b16 %v69
  %v178 = vunpack.c.l.b16 %v70
  %v179 = vunpack.c.l.b16 %v71
  %v180 = vunpack.c.l.b16 %v72
  %v181 = vunpack.c.l.b16 %v73
  %v182 = vunpack.c.l.b16 %v74
  %v183 = vunpack.c.l.b16 %v75
  %v184 = vunpack.c.l.b16 %v76
  %v185 = vunpack.c.l.b16 %v77
  %v186 = vunpack.c.l.b16 %v78
  %v187 = vpack.c.b16 %v170, %v169
  %v188 = vpack.c.b16 %v172, %v171
  %v189 = vpack.c.b16 %v174, %v173
  %v190 = vpack.c.b16 %v176, %v175
  %v191 = vpack.c.b16 %v178, %v177
  %v192 = vpack.c.b16 %v180, %v179
  %v193 = vpack.c.b16 %v182, %v181
  %v194 = vpack.c.b16 %v184, %v183
  %v195 = vpack.c.b16 %v186, %v185
  %vm205 = vcmask 130048
  %v207 = vsel %vm205, %v128, 0
  %v210 = vsel %vm205, %v130, 0
  %v213 = vsel %vm205, %v132, 0
  %v216 = vsel %vm205, %v134, 0
  %v219 = vsel %vm205, %v136, 0
  %v222 = vsel %vm205, %v138, 0
  %v225 = vsel %vm205, %v140, 0
  %v228 = vsel %vm205, %v142, 0
  %230 = vmatprep.subr.bf16.mxu0 0
  %231 = vmatpush1.bf16.msra.mxu0 %v194
  %232 = vmatprep.subr.bf16.mxu0 0
  %233 = vmatpush1.bf16.msra.mxu0 %v193
  %234 = vmatprep.subr.bf16.mxu0 0
  %235 = vmatpush1.bf16.msra.mxu0 %v192
  %236 = vmatprep.subr.bf16.mxu0 0
  %237 = vmatpush1.bf16.msra.mxu0 %v191
  %238 = vmatprep.subr.bf16.mxu0 0
  %239 = vmatpush1.bf16.msra.mxu0 %v190
  %240 = vmatprep.subr.bf16.mxu0 0
  %241 = vmatpush1.bf16.msra.mxu0 %v189
  %242 = vmatprep.subr.bf16.mxu0 0
  %243 = vmatpush1.bf16.msra.mxu0 %v188
  %244 = vmatprep.subr.bf16.mxu0 0
  %245 = vmatpush1.bf16.msra.mxu0 %v187
  %246 = vmatprep.subr.bf16.mxu0 0
  %247 = vmatpush2.bf16.msra.mxu0 0
  %248 = vmatprep.subr.bf16.mxu0 0
  %249 = vmatpush2.bf16.msra.mxu0 0
  %250 = vmatprep.subr.bf16.mxu0 0
  %251 = vmatpush2.bf16.msra.mxu0 0
  %252 = vmatprep.subr.bf16.mxu0 0
  %253 = vmatpush2.bf16.msra.mxu0 0
  %254 = vmatprep.subr.bf16.mxu0 0
  %255 = vmatpush2.bf16.msra.mxu0 0
  %256 = vmatprep.subr.bf16.mxu0 0
  %257 = vmatpush2.bf16.msra.mxu0 0
  %258 = vmatprep.subr.bf16.mxu0 0
  %259 = vmatpush2.bf16.msra.mxu0 0
  %260 = vmatprep.subr.bf16.mxu0 0
  %261 = vmatpush2.bf16.msra.mxu0 %v195
  %262 = vmatprep.mubr.bf16.mxu0 %v207
  %263 = vmatmul.mubr.bf16.gmra.mxu0 %v127
  %v264 = vpop.f32.mrf.mxu0
  %v265 = vadd.f32 0.0, %v264
  %v266 = vpop.f32.mrf.mxu0
  %v267 = vpop.f32.mrf.mxu0
  %v268 = vadd.f32 0.0, %v267
  %v269 = vpop.f32.mrf.mxu0
  %270 = vmatprep.mubr.bf16.mxu0 %v210
  %271 = vmatmul.mubr.bf16.gmra.mxu0 %v129
  %v272 = vpop.f32.mrf.mxu0
  %v273 = vadd.f32 0.0, %v272
  %v274 = vpop.f32.mrf.mxu0
  %v275 = vpop.f32.mrf.mxu0
  %v276 = vadd.f32 0.0, %v275
  %v277 = vpop.f32.mrf.mxu0
  %278 = vmatprep.mubr.bf16.mxu0 %v213
  %279 = vmatmul.mubr.bf16.gmra.mxu0 %v131
  %v280 = vpop.f32.mrf.mxu0
  %v281 = vadd.f32 0.0, %v280
  %v282 = vpop.f32.mrf.mxu0
  %v283 = vpop.f32.mrf.mxu0
  %v284 = vadd.f32 0.0, %v283
  %v285 = vpop.f32.mrf.mxu0
  %286 = vmatprep.mubr.bf16.mxu0 %v216
  %287 = vmatmul.mubr.bf16.gmra.mxu0 %v133
  %v288 = vpop.f32.mrf.mxu0
  %v289 = vadd.f32 0.0, %v288
  %v290 = vpop.f32.mrf.mxu0
  %v291 = vpop.f32.mrf.mxu0
  %v292 = vadd.f32 0.0, %v291
  %v293 = vpop.f32.mrf.mxu0
  %294 = vmatprep.mubr.bf16.mxu0 %v219
  %295 = vmatmul.mubr.bf16.gmra.mxu0 %v135
  %v296 = vpop.f32.mrf.mxu0
  %v297 = vadd.f32 0.0, %v296
  %v298 = vpop.f32.mrf.mxu0
  %v299 = vpop.f32.mrf.mxu0
  %v300 = vadd.f32 0.0, %v299
  %v301 = vpop.f32.mrf.mxu0
  %302 = vmatprep.mubr.bf16.mxu0 %v222
  %303 = vmatmul.mubr.bf16.gmra.mxu0 %v137
  %v304 = vpop.f32.mrf.mxu0
  %v305 = vadd.f32 0.0, %v304
  %v306 = vpop.f32.mrf.mxu0
  %v307 = vpop.f32.mrf.mxu0
  %v308 = vadd.f32 0.0, %v307
  %v309 = vpop.f32.mrf.mxu0
  %310 = vmatprep.mubr.bf16.mxu0 %v225
  %311 = vmatmul.mubr.bf16.gmra.mxu0 %v139
  %v312 = vpop.f32.mrf.mxu0
  %v313 = vadd.f32 0.0, %v312
  %v314 = vpop.f32.mrf.mxu0
  %v315 = vpop.f32.mrf.mxu0
  %v316 = vadd.f32 0.0, %v315
  %v317 = vpop.f32.mrf.mxu0
  %318 = vmatprep.mubr.bf16.mxu0 %v228
  %319 = vmatmul.mubr.bf16.gmra.mxu0 %v141
  %v320 = vpop.f32.mrf.mxu0
  %v321 = vadd.f32 0.0, %v320
  %v322 = vpop.f32.mrf.mxu0
  %v323 = vpop.f32.mrf.mxu0
  %v324 = vadd.f32 0.0, %v323
  %v325 = vpop.f32.mrf.mxu0
  %326 = vdwg.mxu0
  %v327 = vld [vmem:[%s9] sm:$0x1]
  %v328 = vld [vmem:[%s10] sm:$0x1]
  %vm329 = vcmask 523520
  %v330 = vsel %vm329, %v265, 0.0
  %v331 = vsel %vm329, %v268, 0.0
  %v332 = vadd.f32 %v330, %v331
  %v333 = vsel %vm329, %v273, 0.0
  %v334 = vadd.f32 %v332, %v333
  %v335 = vsel %vm329, %v276, 0.0
  %v336 = vadd.f32 %v334, %v335
  %v337 = vsel %vm329, %v281, 0.0
  %v338 = vadd.f32 %v336, %v337
  %v339 = vsel %vm329, %v284, 0.0
  %v340 = vadd.f32 %v338, %v339
  %v341 = vsel %vm329, %v289, 0.0
  %v342 = vadd.f32 %v340, %v341
  %v343 = vsel %vm329, %v292, 0.0
  %v344 = vadd.f32 %v342, %v343
  %v345 = vrot.slane %v344, 4
  %v346 = vadd.f32 %v344, %v345
  %v347 = vrot.slane %v346, 2
  %v348 = vadd.f32 %v346, %v347
  %v349 = vrot.slane %v348, 1
  %v350 = vadd.f32 %v348, %v349
  %v351 = vsel %vm329, %v297, 0.0
  %v352 = vsel %vm329, %v300, 0.0
  %v353 = vadd.f32 %v351, %v352
  %v354 = vsel %vm329, %v305, 0.0
  %v355 = vadd.f32 %v353, %v354
  %v356 = vsel %vm329, %v308, 0.0
  %v357 = vadd.f32 %v355, %v356
  %v358 = vsel %vm329, %v313, 0.0
  %v359 = vadd.f32 %v357, %v358
  %v360 = vsel %vm329, %v316, 0.0
  %v361 = vadd.f32 %v359, %v360
  %v362 = vsel %vm329, %v321, 0.0
  %v363 = vadd.f32 %v361, %v362
  %v364 = vsel %vm329, %v324, 0.0
  %v365 = vadd.f32 %v363, %v364
  %v366 = vrot.slane %v365, 4
  %v367 = vadd.f32 %v365, %v366
  %v368 = vrot.slane %v367, 2
  %v369 = vadd.f32 %v367, %v368
  %v370 = vrot.slane %v369, 1
  %v371 = vadd.f32 %v369, %v370
  %v372 = vmul.f32 %v265, %v265
  %v373 = vmul.f32 %v268, %v268
  %v374 = vmul.f32 %v273, %v273
  %v375 = vmul.f32 %v276, %v276
  %v376 = vmul.f32 %v281, %v281
  %v377 = vmul.f32 %v284, %v284
  %v378 = vmul.f32 %v289, %v289
  %v379 = vmul.f32 %v292, %v292
  %v380 = vmul.f32 %v297, %v297
  %v381 = vmul.f32 %v300, %v300
  %v382 = vmul.f32 %v305, %v305
  %v383 = vmul.f32 %v308, %v308
  %v384 = vmul.f32 %v313, %v313
  %v385 = vmul.f32 %v316, %v316
  %v386 = vmul.f32 %v321, %v321
  %v387 = vmul.f32 %v324, %v324
  %v388 = vsel %vm329, %v372, 0.0
  %v389 = vsel %vm329, %v373, 0.0
  %v390 = vadd.f32 %v388, %v389
  %v391 = vsel %vm329, %v374, 0.0
  %v392 = vadd.f32 %v390, %v391
  %v393 = vsel %vm329, %v375, 0.0
  %v394 = vadd.f32 %v392, %v393
  %v395 = vsel %vm329, %v376, 0.0
  %v396 = vadd.f32 %v394, %v395
  %v397 = vsel %vm329, %v377, 0.0
  %v398 = vadd.f32 %v396, %v397
  %v399 = vsel %vm329, %v378, 0.0
  %v400 = vadd.f32 %v398, %v399
  %v401 = vsel %vm329, %v379, 0.0
  %v402 = vadd.f32 %v400, %v401
  %v403 = vrot.slane %v402, 4
  %v404 = vadd.f32 %v402, %v403
  %v405 = vrot.slane %v404, 2
  %v406 = vadd.f32 %v404, %v405
  %v407 = vrot.slane %v406, 1
  %v408 = vadd.f32 %v406, %v407
  %v409 = vsel %vm329, %v380, 0.0
  %v410 = vsel %vm329, %v381, 0.0
  %v411 = vadd.f32 %v409, %v410
  %v412 = vsel %vm329, %v382, 0.0
  %v413 = vadd.f32 %v411, %v412
  %v414 = vsel %vm329, %v383, 0.0
  %v415 = vadd.f32 %v413, %v414
  %v416 = vsel %vm329, %v384, 0.0
  %v417 = vadd.f32 %v415, %v416
  %v418 = vsel %vm329, %v385, 0.0
  %v419 = vadd.f32 %v417, %v418
  %v420 = vsel %vm329, %v386, 0.0
  %v421 = vadd.f32 %v419, %v420
  %v422 = vsel %vm329, %v387, 0.0
  %v423 = vadd.f32 %v421, %v422
  %v424 = vrot.slane %v423, 4
  %v425 = vadd.f32 %v423, %v424
  %v426 = vrot.slane %v425, 2
  %v427 = vadd.f32 %v425, %v426
  %v428 = vrot.slane %v427, 1
  %v429 = vadd.f32 %v427, %v428
  %vm432 = vcmask 1041409
  %v433 = vsel %vm432, %v371, %v350
  %vm437 = vcmask 1043459
  %v438 = vsel %vm437, %v429, %v408
  %vm440 = vcmask 1041408
  %v441 = vsel %vm440, %v433, %v438
  %443 = vrot.lane.b32.xlu0 %v441, 96
  %v444 = vpop.permute.xlu0 %443
  %vm445 = vcmask 261120
  %v446 = vsel %vm445, %v444, 0
  %448 = vmatprep.subr.mxu0 0.0
  %449 = vmatpush1.msra.mxu0 0.0
  %450 = vmatprep.subr.mxu0 0.0
  %451 = vmatpush1.msra.mxu0 0.0
  %452 = vmatprep.subr.mxu0 0.0
  %453 = vmatpush1.msra.mxu0 0.0
  %454 = vmatprep.subr.mxu0 0.0
  %455 = vmatpush1.msra.mxu0 0.0
  %456 = vmatprep.subr.mxu0 0.0
  %457 = vmatpush1.msra.mxu0 0.0
  %458 = vmatprep.subr.mxu0 0.0
  %459 = vmatpush1.msra.mxu0 0.0
  %460 = vmatprep.subr.mxu0 0.0
  %461 = vmatpush1.msra.mxu0 0.0
  %462 = vmatprep.subr.mxu0 0.0
  %463 = vmatpush1.msra.mxu0 0.0
  %464 = vmatprep.subr.mxu0 0.0
  %465 = vmatpush1.msra.mxu0 0.0
  %466 = vmatprep.subr.mxu0 0.0
  %467 = vmatpush1.msra.mxu0 0.0
  %468 = vmatprep.subr.mxu0 0.0
  %469 = vmatpush1.msra.mxu0 0.0
  %470 = vmatprep.subr.mxu0 0.0
  %471 = vmatpush1.msra.mxu0 0.0
  %472 = vmatprep.subr.mxu0 0.0
  %473 = vmatpush1.msra.mxu0 %v42
  %474 = vmatprep.subr.mxu0 0.0
  %475 = vmatpush1.msra.mxu0 %v41
  %476 = vmatprep.subr.mxu0 0.0
  %477 = vmatpush1.msra.mxu0 %v40
  %478 = vmatprep.subr.mxu0 0.0
  %479 = vmatpush1.msra.mxu0 %v39
  %480 = vmatprep.subr.mxu0 0.0
  %481 = vmatpush2.msra.mxu0 0.0
  %482 = vmatprep.subr.mxu0 0.0
  %483 = vmatpush2.msra.mxu0 0.0
  %484 = vmatprep.subr.mxu0 0.0
  %485 = vmatpush2.msra.mxu0 0.0
  %486 = vmatprep.subr.mxu0 0.0
  %487 = vmatpush2.msra.mxu0 0.0
  %488 = vmatprep.subr.mxu0 0.0
  %489 = vmatpush2.msra.mxu0 0.0
  %490 = vmatprep.subr.mxu0 0.0
  %491 = vmatpush2.msra.mxu0 0.0
  %492 = vmatprep.subr.mxu0 0.0
  %493 = vmatpush2.msra.mxu0 0.0
  %494 = vmatprep.subr.mxu0 0.0
  %495 = vmatpush2.msra.mxu0 0.0
  %496 = vmatprep.subr.mxu0 0.0
  %497 = vmatpush2.msra.mxu0 0.0
  %498 = vmatprep.subr.mxu0 0.0
  %499 = vmatpush2.msra.mxu0 0.0
  %500 = vmatprep.subr.mxu0 0.0
  %501 = vmatpush2.msra.mxu0 0.0
  %502 = vmatprep.subr.mxu0 0.0
  %503 = vmatpush2.msra.mxu0 0.0
  %504 = vmatprep.subr.mxu0 0.0
  %505 = vmatpush2.msra.mxu0 0.0
  %506 = vmatprep.subr.mxu0 0.0
  %507 = vmatpush2.msra.mxu0 0.0
  %508 = vmatprep.subr.mxu0 0.0
  %509 = vmatpush2.msra.mxu0 0.0
  %510 = vmatprep.subr.mxu0 0.0
  %511 = vmatpush2.msra.mxu0 0.0
  %512 = vmatprep.mubr.f32.mxu0 0.0
  %513 = vmatmul.mubr.f32.gmra.mxu0 %v446
  %v514 = vpop.f32.mrf.mxu0
  %v515 = vadd.f32 0.0, %v514
  %v516 = vpop.f32.mrf.mxu0
  %517 = vdwg.mxu0
  %v518 = vmul.f32 %v515, %v515
  %v520 = vrot.slane %v518, 6
  %v522 = vsub.f32 %v515, %v520
  %v523 = vadd.f32 %v522, 1e-05
  %v524 = vrsqrt.pop %v523
  %v525 = vsel %vm440, %v515, %v524
  %v527 = vsel %vm205, %v525, 0
  %529 = vmatprep.subr.mxu0 0.0
  %530 = vmatpush1.msra.mxu0 0.0
  %531 = vmatprep.subr.mxu0 0.0
  %532 = vmatpush1.msra.mxu0 0.0
  %533 = vmatprep.subr.mxu0 0.0
  %534 = vmatpush1.msra.mxu0 0.0
  %535 = vmatprep.subr.mxu0 0.0
  %536 = vmatpush1.msra.mxu0 0.0
  %537 = vmatprep.subr.mxu0 0.0
  %538 = vmatpush1.msra.mxu0 0.0
  %539 = vmatprep.subr.mxu0 0.0
  %540 = vmatpush1.msra.mxu0 0.0
  %541 = vmatprep.subr.mxu0 0.0
  %542 = vmatpush1.msra.mxu0 0.0
  %543 = vmatprep.subr.mxu0 0.0
  %544 = vmatpush1.msra.mxu0 0.0
  %545 = vmatprep.subr.mxu0 0.0
  %546 = vmatpush1.msra.mxu0 0.0
  %547 = vmatprep.subr.mxu0 0.0
  %548 = vmatpush1.msra.mxu0 0.0
  %549 = vmatprep.subr.mxu0 0.0
  %550 = vmatpush1.msra.mxu0 0.0
  %551 = vmatprep.subr.mxu0 0.0
  %552 = vmatpush1.msra.mxu0 0.0
  %553 = vmatprep.subr.mxu0 0.0
  %554 = vmatpush1.msra.mxu0 0.0
  %555 = vmatprep.subr.mxu0 0.0
  %556 = vmatpush1.msra.mxu0 0.0
  %557 = vmatprep.subr.mxu0 0.0
  %558 = vmatpush1.msra.mxu0 %v44
  %559 = vmatprep.subr.mxu0 0.0
  %560 = vmatpush1.msra.mxu0 %v43
  %561 = vmatprep.subr.mxu0 0.0
  %562 = vmatpush2.msra.mxu0 0.0
  %563 = vmatprep.subr.mxu0 0.0
  %564 = vmatpush2.msra.mxu0 0.0
  %565 = vmatprep.subr.mxu0 0.0
  %566 = vmatpush2.msra.mxu0 0.0
  %567 = vmatprep.subr.mxu0 0.0
  %568 = vmatpush2.msra.mxu0 0.0
  %569 = vmatprep.subr.mxu0 0.0
  %570 = vmatpush2.msra.mxu0 0.0
  %571 = vmatprep.subr.mxu0 0.0
  %572 = vmatpush2.msra.mxu0 0.0
  %573 = vmatprep.subr.mxu0 0.0
  %574 = vmatpush2.msra.mxu0 0.0
  %575 = vmatprep.subr.mxu0 0.0
  %576 = vmatpush2.msra.mxu0 0.0
  %577 = vmatprep.subr.mxu0 0.0
  %578 = vmatpush2.msra.mxu0 0.0
  %579 = vmatprep.subr.mxu0 0.0
  %580 = vmatpush2.msra.mxu0 0.0
  %581 = vmatprep.subr.mxu0 0.0
  %582 = vmatpush2.msra.mxu0 0.0
  %583 = vmatprep.subr.mxu0 0.0
  %584 = vmatpush2.msra.mxu0 0.0
  %585 = vmatprep.subr.mxu0 0.0
  %586 = vmatpush2.msra.mxu0 0.0
  %587 = vmatprep.subr.mxu0 0.0
  %588 = vmatpush2.msra.mxu0 0.0
  %589 = vmatprep.subr.mxu0 0.0
  %590 = vmatpush2.msra.mxu0 0.0
  %591 = vmatprep.subr.mxu0 0.0
  %592 = vmatpush2.msra.mxu0 0.0
  %593 = vmatprep.mubr.f32.mxu0 0.0
  %594 = vmatmul.mubr.f32.gmra.mxu0 %v527
  %v595 = vpop.f32.mrf.mxu0
  %v596 = vadd.f32 0.0, %v595
  %v597 = vpop.f32.mrf.mxu0
  %598 = vdwg.mxu0
  %v600 = vlaneseq
  %v601 = vshrl.u32 %v600, 7
  %v602 = vsub.s32 0, %v601
  %v603 = vrot.slane %v327, %v602
  %v605 = vmul.f32 %v596, %v603
  %v607 = vrot.slane %v605, 2
  %v609 = vmul.f32 %v596, %v607
  %v611 = vlaneseq
  %v612 = vshrl.u32 %v611, 7
  %v613 = vsub.s32 0, %v612
  %v614 = vrot.slane %v328, %v613
  %v616 = vsub.f32 %v614, %v609
  %v618 = vunpack.c.l.s4 1966171168
  %v619 = vunpack.c.0.s8 %v618
  %v620 = vlaneseq
  %v621 = vshrl.u32 %v620, 7
  %v622 = vsub.s32 %v619, %v621
  %v623 = vrot.slane %v605, %v622
  %v624 = vcombine.high %v623, %v623
  %v626 = vunpack.c.l.s4 1966171168
  %v627 = vunpack.c.0.s8 %v626
  %v628 = vlaneseq
  %v629 = vshrl.u32 %v628, 7
  %v630 = vsub.s32 %v627, %v629
  %v631 = vrot.slane %v623, %v630
  %v633 = vunpack.c.l.s4 1966171168
  %v634 = vunpack.c.0.s8 %v633
  %v635 = vlaneseq
  %v636 = vshrl.u32 %v635, 7
  %v637 = vsub.s32 %v634, %v636
  %v638 = vrot.slane %v624, %v637
  %v639 = vcombine.high %v631, %v631
  %v640 = vcombine.high %v638, %v638
  %v641 = vlaneseq
  %v642 = vshrl.u32 %v641, 7
  %v643 = vsub.s32 0, %v642
  %v644 = vrot.slane %v639, %v643
  %v645 = vlaneseq
  %v646 = vshrl.u32 %v645, 7
  %v647 = vsub.s32 0, %v646
  %v648 = vrot.slane %v640, %v647
  %649 = vrot.lane.b32.xlu0 %v644, 32
  %v650 = vpop.permute.xlu0 %649
  %651 = vrot.lane.b32.xlu0 %v648, 32
  %v652 = vpop.permute.xlu0 %651
  %v655 = vmul.f32 %v265, %v650
  %v656 = vmul.f32 %v268, %v650
  %v657 = vmul.f32 %v273, %v650
  %v658 = vmul.f32 %v276, %v650
  %v659 = vmul.f32 %v281, %v650
  %v660 = vmul.f32 %v284, %v650
  %v661 = vmul.f32 %v289, %v650
  %v662 = vmul.f32 %v292, %v650
  %v663 = vmul.f32 %v297, %v652
  %v664 = vmul.f32 %v300, %v652
  %v665 = vmul.f32 %v305, %v652
  %v666 = vmul.f32 %v308, %v652
  %v667 = vmul.f32 %v313, %v652
  %v668 = vmul.f32 %v316, %v652
  %v669 = vmul.f32 %v321, %v652
  %v670 = vmul.f32 %v324, %v652
  %v673 = vunpack.c.l.s4 1966171168
  %v674 = vunpack.c.0.s8 %v673
  %v675 = vlaneseq
  %v676 = vshrl.u32 %v675, 7
  %v677 = vsub.s32 %v674, %v676
  %v678 = vrot.slane %v616, %v677
  %v679 = vcombine.high %v678, %v678
  %v681 = vunpack.c.l.s4 1966171168
  %v682 = vunpack.c.0.s8 %v681
  %v683 = vlaneseq
  %v684 = vshrl.u32 %v683, 7
  %v685 = vsub.s32 %v682, %v684
  %v686 = vrot.slane %v678, %v685
  %v688 = vunpack.c.l.s4 1966171168
  %v689 = vunpack.c.0.s8 %v688
  %v690 = vlaneseq
  %v691 = vshrl.u32 %v690, 7
  %v692 = vsub.s32 %v689, %v691
  %v693 = vrot.slane %v679, %v692
  %v694 = vlaneseq
  %v695 = vshrl.u32 %v694, 7
  %v696 = vsub.s32 0, %v695
  %v697 = vrot.slane %v686, %v696
  %v698 = vlaneseq
  %v699 = vshrl.u32 %v698, 7
  %v700 = vsub.s32 0, %v699
  %v701 = vrot.slane %v693, %v700
  %702 = vrot.lane.b32.xlu0 %v697, 32
  %v703 = vpop.permute.xlu0 %702
  %704 = vrot.lane.b32.xlu0 %v701, 32
  %v705 = vpop.permute.xlu0 %704
  %v708 = vadd.f32 %v655, %v703
  %v709 = vadd.f32 %v656, %v703
  %v710 = vadd.f32 %v657, %v703
  %v711 = vadd.f32 %v658, %v703
  %v712 = vadd.f32 %v659, %v703
  %v713 = vadd.f32 %v660, %v703
  %v714 = vadd.f32 %v661, %v703
  %v715 = vadd.f32 %v662, %v703
  %v716 = vadd.f32 %v663, %v705
  %v717 = vadd.f32 %v664, %v705
  %v718 = vadd.f32 %v665, %v705
  %v719 = vadd.f32 %v666, %v705
  %v720 = vadd.f32 %v667, %v705
  %v721 = vadd.f32 %v668, %v705
  %v722 = vadd.f32 %v669, %v705
  %v723 = vadd.f32 %v670, %v705
  %v724 = vld [vmem:[%s2] sm:$0x1]
  %v725 = vld [vmem:[%s3] sm:$0x1]
  %v726 = vsel %vm445, %v265, 0.0
  %v727 = vsel %vm445, %v268, 0.0
  %v728 = vadd.f32 %v726, %v727
  %v729 = vsel %vm445, %v273, 0.0
  %v730 = vadd.f32 %v728, %v729
  %v731 = vsel %vm445, %v276, 0.0
  %v732 = vadd.f32 %v730, %v731
  %v733 = vsel %vm445, %v281, 0.0
  %v734 = vadd.f32 %v732, %v733
  %v735 = vsel %vm445, %v284, 0.0
  %v736 = vadd.f32 %v734, %v735
  %v737 = vsel %vm445, %v289, 0.0
  %v738 = vadd.f32 %v736, %v737
  %v739 = vsel %vm445, %v292, 0.0
  %v740 = vadd.f32 %v738, %v739
  %v741 = vrot.slane %v740, 4
  %v742 = vadd.f32 %v740, %v741
  %v743 = vrot.slane %v742, 2
  %v744 = vadd.f32 %v742, %v743
  %v745 = vrot.slane %v744, 1
  %v746 = vadd.f32 %v744, %v745
  %v747 = vsel %vm445, %v297, 0.0
  %v748 = vsel %vm445, %v300, 0.0
  %v749 = vadd.f32 %v747, %v748
  %v750 = vsel %vm445, %v305, 0.0
  %v751 = vadd.f32 %v749, %v750
  %v752 = vsel %vm445, %v308, 0.0
  %v753 = vadd.f32 %v751, %v752
  %v754 = vsel %vm445, %v313, 0.0
  %v755 = vadd.f32 %v753, %v754
  %v756 = vsel %vm445, %v316, 0.0
  %v757 = vadd.f32 %v755, %v756
  %v758 = vsel %vm445, %v321, 0.0
  %v759 = vadd.f32 %v757, %v758
  %v760 = vsel %vm445, %v324, 0.0
  %v761 = vadd.f32 %v759, %v760
  %v762 = vrot.slane %v761, 4
  %v763 = vadd.f32 %v761, %v762
  %v764 = vrot.slane %v763, 2
  %v765 = vadd.f32 %v763, %v764
  %v766 = vrot.slane %v765, 1
  %v767 = vadd.f32 %v765, %v766
  %v768 = vsel %vm445, %v372, 0.0
  %v769 = vsel %vm445, %v373, 0.0
  %v770 = vadd.f32 %v768, %v769
  %v771 = vsel %vm445, %v374, 0.0
  %v772 = vadd.f32 %v770, %v771
  %v773 = vsel %vm445, %v375, 0.0
  %v774 = vadd.f32 %v772, %v773
  %v775 = vsel %vm445, %v376, 0.0
  %v776 = vadd.f32 %v774, %v775
  %v777 = vsel %vm445, %v377, 0.0
  %v778 = vadd.f32 %v776, %v777
  %v779 = vsel %vm445, %v378, 0.0
  %v780 = vadd.f32 %v778, %v779
  %v781 = vsel %vm445, %v379, 0.0
  %v782 = vadd.f32 %v780, %v781
  %v783 = vrot.slane %v782, 4
  %v784 = vadd.f32 %v782, %v783
  %v785 = vrot.slane %v784, 2
  %v786 = vadd.f32 %v784, %v785
  %v787 = vrot.slane %v786, 1
  %v788 = vadd.f32 %v786, %v787
  %v789 = vsel %vm445, %v380, 0.0
  %v790 = vsel %vm445, %v381, 0.0
  %v791 = vadd.f32 %v789, %v790
  %v792 = vsel %vm445, %v382, 0.0
  %v793 = vadd.f32 %v791, %v792
  %v794 = vsel %vm445, %v383, 0.0
  %v795 = vadd.f32 %v793, %v794
  %v796 = vsel %vm445, %v384, 0.0
  %v797 = vadd.f32 %v795, %v796
  %v798 = vsel %vm445, %v385, 0.0
  %v799 = vadd.f32 %v797, %v798
  %v800 = vsel %vm445, %v386, 0.0
  %v801 = vadd.f32 %v799, %v800
  %v802 = vsel %vm445, %v387, 0.0
  %v803 = vadd.f32 %v801, %v802
  %v804 = vrot.slane %v803, 4
  %v805 = vadd.f32 %v803, %v804
  %v806 = vrot.slane %v805, 2
  %v807 = vadd.f32 %v805, %v806
  %v808 = vrot.slane %v807, 1
  %v809 = vadd.f32 %v807, %v808
  %v812 = vsel %vm432, %v767, %v746
  %v816 = vsel %vm437, %v809, %v788
  %v818 = vsel %vm440, %v812, %v816
  %v820 = vsel %vm445, %v818, 0
  %822 = vmatprep.subr.mxu0 0.0
  %823 = vmatpush1.msra.mxu0 0.0
  %824 = vmatprep.subr.mxu0 0.0
  %825 = vmatpush1.msra.mxu0 0.0
  %826 = vmatprep.subr.mxu0 0.0
  %827 = vmatpush1.msra.mxu0 0.0
  %828 = vmatprep.subr.mxu0 0.0
  %829 = vmatpush1.msra.mxu0 0.0
  %830 = vmatprep.subr.mxu0 0.0
  %831 = vmatpush1.msra.mxu0 0.0
  %832 = vmatprep.subr.mxu0 0.0
  %833 = vmatpush1.msra.mxu0 0.0
  %834 = vmatprep.subr.mxu0 0.0
  %835 = vmatpush1.msra.mxu0 0.0
  %836 = vmatprep.subr.mxu0 0.0
  %837 = vmatpush1.msra.mxu0 0.0
  %838 = vmatprep.subr.mxu0 0.0
  %839 = vmatpush1.msra.mxu0 0.0
  %840 = vmatprep.subr.mxu0 0.0
  %841 = vmatpush1.msra.mxu0 0.0
  %842 = vmatprep.subr.mxu0 0.0
  %843 = vmatpush1.msra.mxu0 0.0
  %844 = vmatprep.subr.mxu0 0.0
  %845 = vmatpush1.msra.mxu0 0.0
  %846 = vmatprep.subr.mxu0 0.0
  %847 = vmatpush1.msra.mxu0 %v42
  %848 = vmatprep.subr.mxu0 0.0
  %849 = vmatpush1.msra.mxu0 %v41
  %850 = vmatprep.subr.mxu0 0.0
  %851 = vmatpush1.msra.mxu0 %v40
  %852 = vmatprep.subr.mxu0 0.0
  %853 = vmatpush1.msra.mxu0 %v39
  %854 = vmatprep.subr.mxu0 0.0
  %855 = vmatpush2.msra.mxu0 0.0
  %856 = vmatprep.subr.mxu0 0.0
  %857 = vmatpush2.msra.mxu0 0.0
  %858 = vmatprep.subr.mxu0 0.0
  %859 = vmatpush2.msra.mxu0 0.0
  %860 = vmatprep.subr.mxu0 0.0
  %861 = vmatpush2.msra.mxu0 0.0
  %862 = vmatprep.subr.mxu0 0.0
  %863 = vmatpush2.msra.mxu0 0.0
  %864 = vmatprep.subr.mxu0 0.0
  %865 = vmatpush2.msra.mxu0 0.0
  %866 = vmatprep.subr.mxu0 0.0
  %867 = vmatpush2.msra.mxu0 0.0
  %868 = vmatprep.subr.mxu0 0.0
  %869 = vmatpush2.msra.mxu0 0.0
  %870 = vmatprep.subr.mxu0 0.0
  %871 = vmatpush2.msra.mxu0 0.0
  %872 = vmatprep.subr.mxu0 0.0
  %873 = vmatpush2.msra.mxu0 0.0
  %874 = vmatprep.subr.mxu0 0.0
  %875 = vmatpush2.msra.mxu0 0.0
  %876 = vmatprep.subr.mxu0 0.0
  %877 = vmatpush2.msra.mxu0 0.0
  %878 = vmatprep.subr.mxu0 0.0
  %879 = vmatpush2.msra.mxu0 0.0
  %880 = vmatprep.subr.mxu0 0.0
  %881 = vmatpush2.msra.mxu0 0.0
  %882 = vmatprep.subr.mxu0 0.0
  %883 = vmatpush2.msra.mxu0 0.0
  %884 = vmatprep.subr.mxu0 0.0
  %885 = vmatpush2.msra.mxu0 0.0
  %886 = vmatprep.mubr.f32.mxu0 0.0
  %887 = vmatmul.mubr.f32.gmra.mxu0 %v820
  %v888 = vpop.f32.mrf.mxu0
  %v889 = vadd.f32 0.0, %v888
  %v890 = vpop.f32.mrf.mxu0
  %891 = vdwg.mxu0
  %v892 = vmul.f32 %v889, %v889
  %v894 = vrot.slane %v892, 6
  %v896 = vsub.f32 %v889, %v894
  %v897 = vadd.f32 %v896, 1e-05
  %v898 = vrsqrt.pop %v897
  %v899 = vsel %vm440, %v889, %v898
  %v901 = vsel %vm205, %v899, 0
  %903 = vmatprep.subr.mxu0 0.0
  %904 = vmatpush1.msra.mxu0 0.0
  %905 = vmatprep.subr.mxu0 0.0
  %906 = vmatpush1.msra.mxu0 0.0
  %907 = vmatprep.subr.mxu0 0.0
  %908 = vmatpush1.msra.mxu0 0.0
  %909 = vmatprep.subr.mxu0 0.0
  %910 = vmatpush1.msra.mxu0 0.0
  %911 = vmatprep.subr.mxu0 0.0
  %912 = vmatpush1.msra.mxu0 0.0
  %913 = vmatprep.subr.mxu0 0.0
  %914 = vmatpush1.msra.mxu0 0.0
  %915 = vmatprep.subr.mxu0 0.0
  %916 = vmatpush1.msra.mxu0 0.0
  %917 = vmatprep.subr.mxu0 0.0
  %918 = vmatpush1.msra.mxu0 0.0
  %919 = vmatprep.subr.mxu0 0.0
  %920 = vmatpush1.msra.mxu0 0.0
  %921 = vmatprep.subr.mxu0 0.0
  %922 = vmatpush1.msra.mxu0 0.0
  %923 = vmatprep.subr.mxu0 0.0
  %924 = vmatpush1.msra.mxu0 0.0
  %925 = vmatprep.subr.mxu0 0.0
  %926 = vmatpush1.msra.mxu0 0.0
  %927 = vmatprep.subr.mxu0 0.0
  %928 = vmatpush1.msra.mxu0 0.0
  %929 = vmatprep.subr.mxu0 0.0
  %930 = vmatpush1.msra.mxu0 0.0
  %931 = vmatprep.subr.mxu0 0.0
  %932 = vmatpush1.msra.mxu0 %v44
  %933 = vmatprep.subr.mxu0 0.0
  %934 = vmatpush1.msra.mxu0 %v43
  %935 = vmatprep.subr.mxu0 0.0
  %936 = vmatpush2.msra.mxu0 0.0
  %937 = vmatprep.subr.mxu0 0.0
  %938 = vmatpush2.msra.mxu0 0.0
  %939 = vmatprep.subr.mxu0 0.0
  %940 = vmatpush2.msra.mxu0 0.0
  %941 = vmatprep.subr.mxu0 0.0
  %942 = vmatpush2.msra.mxu0 0.0
  %943 = vmatprep.subr.mxu0 0.0
  %944 = vmatpush2.msra.mxu0 0.0
  %945 = vmatprep.subr.mxu0 0.0
  %946 = vmatpush2.msra.mxu0 0.0
  %947 = vmatprep.subr.mxu0 0.0
  %948 = vmatpush2.msra.mxu0 0.0
  %949 = vmatprep.subr.mxu0 0.0
  %950 = vmatpush2.msra.mxu0 0.0
  %951 = vmatprep.subr.mxu0 0.0
  %952 = vmatpush2.msra.mxu0 0.0
  %953 = vmatprep.subr.mxu0 0.0
  %954 = vmatpush2.msra.mxu0 0.0
  %955 = vmatprep.subr.mxu0 0.0
  %956 = vmatpush2.msra.mxu0 0.0
  %957 = vmatprep.subr.mxu0 0.0
  %958 = vmatpush2.msra.mxu0 0.0
  %959 = vmatprep.subr.mxu0 0.0
  %960 = vmatpush2.msra.mxu0 0.0
  %961 = vmatprep.subr.mxu0 0.0
  %962 = vmatpush2.msra.mxu0 0.0
  %963 = vmatprep.subr.mxu0 0.0
  %964 = vmatpush2.msra.mxu0 0.0
  %965 = vmatprep.subr.mxu0 0.0
  %966 = vmatpush2.msra.mxu0 0.0
  %967 = vmatprep.mubr.f32.mxu0 0.0
  %968 = vmatmul.mubr.f32.gmra.mxu0 %v901
  %v969 = vpop.f32.mrf.mxu0
  %v970 = vadd.f32 0.0, %v969
  %v971 = vpop.f32.mrf.mxu0
  %972 = vdwg.mxu0
  %v974 = vlaneseq
  %v975 = vshrl.u32 %v974, 7
  %v976 = vsub.s32 0, %v975
  %v977 = vrot.slane %v724, %v976
  %v979 = vmul.f32 %v970, %v977
  %v981 = vrot.slane %v979, 2
  %v983 = vmul.f32 %v970, %v981
  %v985 = vlaneseq
  %v986 = vshrl.u32 %v985, 7
  %v987 = vsub.s32 0, %v986
  %v988 = vrot.slane %v725, %v987
  %v990 = vsub.f32 %v988, %v983
  %v992 = vunpack.c.l.s4 1966171168
  %v993 = vunpack.c.0.s8 %v992
  %v994 = vlaneseq
  %v995 = vshrl.u32 %v994, 7
  %v996 = vsub.s32 %v993, %v995
  %v997 = vrot.slane %v979, %v996
  %v998 = vcombine.high %v997, %v997
  %v1000 = vunpack.c.l.s4 1966171168
  %v1001 = vunpack.c.0.s8 %v1000
  %v1002 = vlaneseq
  %v1003 = vshrl.u32 %v1002, 7
  %v1004 = vsub.s32 %v1001, %v1003
  %v1005 = vrot.slane %v997, %v1004
  %v1007 = vunpack.c.l.s4 1966171168
  %v1008 = vunpack.c.0.s8 %v1007
  %v1009 = vlaneseq
  %v1010 = vshrl.u32 %v1009, 7
  %v1011 = vsub.s32 %v1008, %v1010
  %v1012 = vrot.slane %v998, %v1011
  %v1013 = vcombine.high %v1005, %v1005
  %v1014 = vcombine.high %v1012, %v1012
  %v1015 = vlaneseq
  %v1016 = vshrl.u32 %v1015, 7
  %v1017 = vsub.s32 0, %v1016
  %v1018 = vrot.slane %v1013, %v1017
  %v1019 = vlaneseq
  %v1020 = vshrl.u32 %v1019, 7
  %v1021 = vsub.s32 0, %v1020
  %v1022 = vrot.slane %v1014, %v1021
  %v1025 = vmul.f32 %v265, %v1018
  %v1026 = vmul.f32 %v268, %v1018
  %v1027 = vmul.f32 %v273, %v1018
  %v1028 = vmul.f32 %v276, %v1018
  %v1029 = vmul.f32 %v281, %v1018
  %v1030 = vmul.f32 %v284, %v1018
  %v1031 = vmul.f32 %v289, %v1018
  %v1032 = vmul.f32 %v292, %v1018
  %v1033 = vmul.f32 %v297, %v1022
  %v1034 = vmul.f32 %v300, %v1022
  %v1035 = vmul.f32 %v305, %v1022
  %v1036 = vmul.f32 %v308, %v1022
  %v1037 = vmul.f32 %v313, %v1022
  %v1038 = vmul.f32 %v316, %v1022
  %v1039 = vmul.f32 %v321, %v1022
  %v1040 = vmul.f32 %v324, %v1022
  %v1043 = vunpack.c.l.s4 1966171168
  %v1044 = vunpack.c.0.s8 %v1043
  %v1045 = vlaneseq
  %v1046 = vshrl.u32 %v1045, 7
  %v1047 = vsub.s32 %v1044, %v1046
  %v1048 = vrot.slane %v990, %v1047
  %v1049 = vcombine.high %v1048, %v1048
  %v1051 = vunpack.c.l.s4 1966171168
  %v1052 = vunpack.c.0.s8 %v1051
  %v1053 = vlaneseq
  %v1054 = vshrl.u32 %v1053, 7
  %v1055 = vsub.s32 %v1052, %v1054
  %v1056 = vrot.slane %v1048, %v1055
  %v1058 = vunpack.c.l.s4 1966171168
  %v1059 = vunpack.c.0.s8 %v1058
  %v1060 = vlaneseq
  %v1061 = vshrl.u32 %v1060, 7
  %v1062 = vsub.s32 %v1059, %v1061
  %v1063 = vrot.slane %v1049, %v1062
  %v1064 = vlaneseq
  %v1065 = vshrl.u32 %v1064, 7
  %v1066 = vsub.s32 0, %v1065
  %v1067 = vrot.slane %v1056, %v1066
  %v1068 = vlaneseq
  %v1069 = vshrl.u32 %v1068, 7
  %v1070 = vsub.s32 0, %v1069
  %v1071 = vrot.slane %v1063, %v1070
  %v1074 = vadd.f32 %v1025, %v1067
  %v1075 = vadd.f32 %v1026, %v1067
  %v1076 = vadd.f32 %v1027, %v1067
  %v1077 = vadd.f32 %v1028, %v1067
  %v1078 = vadd.f32 %v1029, %v1067
  %v1079 = vadd.f32 %v1030, %v1067
  %v1080 = vadd.f32 %v1031, %v1067
  %v1081 = vadd.f32 %v1032, %v1067
  %v1082 = vadd.f32 %v1033, %v1071
  %v1083 = vadd.f32 %v1034, %v1071
  %v1084 = vadd.f32 %v1035, %v1071
  %v1085 = vadd.f32 %v1036, %v1071
  %v1086 = vadd.f32 %v1037, %v1071
  %v1087 = vadd.f32 %v1038, %v1071
  %v1088 = vadd.f32 %v1039, %v1071
  %v1089 = vadd.f32 %v1040, %v1071
  %v1090 = vmax.f32 %v1074, 0.0
  %v1091 = vmax.f32 %v1075, 0.0
  %v1092 = vmax.f32 %v1076, 0.0
  %v1093 = vmax.f32 %v1077, 0.0
  %v1094 = vmax.f32 %v1078, 0.0
  %v1095 = vmax.f32 %v1079, 0.0
  %v1096 = vmax.f32 %v1080, 0.0
  %v1097 = vmax.f32 %v1081, 0.0
  %v1098 = vmax.f32 %v1082, 0.0
  %v1099 = vmax.f32 %v1083, 0.0
  %v1100 = vmax.f32 %v1084, 0.0
  %v1101 = vmax.f32 %v1085, 0.0
  %v1102 = vmax.f32 %v1086, 0.0
  %v1103 = vmax.f32 %v1087, 0.0
  %v1104 = vmax.f32 %v1088, 0.0
  %v1105 = vmax.f32 %v1089, 0.0
  %1106 = vst.msk [vmem:[#allocation2] sm:$0xff] %vm445, 0.0
  %vm1107 = vcmask 254976
  %1108 = vst.msk [vmem:[#allocation2 + $0x8] sm:$0x3] %vm1107, 0.0
  %1109 = vst.msk [vmem:[#allocation2 + $0x10] sm:$0xff] %vm445, 0.0
  %1110 = vst.msk [vmem:[#allocation2 + $0x18] sm:$0x3] %vm1107, 0.0
  %1111 = vst.msk [vmem:[#allocation2 + $0x20] sm:$0xff] %vm445, 0.0
  %1112 = vst.msk [vmem:[#allocation2 + $0x28] sm:$0x3] %vm1107, 0.0
  %1113 = vst.msk [vmem:[#allocation2 + $0x30] sm:$0xff] %vm445, 0.0
  %1114 = vst.msk [vmem:[#allocation2 + $0x38] sm:$0x3] %vm1107, 0.0
  %1115 = vst.msk [vmem:[#allocation2 + $0x40] sm:$0xff] %vm445, 0.0
  %1116 = vst.msk [vmem:[#allocation2 + $0x48] sm:$0x3] %vm1107, 0.0
  %1117 = vst.msk [vmem:[#allocation2 + $0x50] sm:$0xff] %vm445, 0.0
  %1118 = vst.msk [vmem:[#allocation2 + $0x58] sm:$0x3] %vm1107, 0.0
  %1119 = vst.msk [vmem:[#allocation2 + $0x60] sm:$0xff] %vm445, 0.0
  %1120 = vst.msk [vmem:[#allocation2 + $0x68] sm:$0x3] %vm1107, 0.0
  %1121 = vst.msk [vmem:[#allocation2 + $0x70] sm:$0xff] %vm445, 0.0
  %1122 = vst.msk [vmem:[#allocation2 + $0x78] sm:$0x3] %vm1107, 0.0
  %1123 = vst.msk [vmem:[#allocation2 + $0x80] sm:$0xff] %vm445, 0.0
  %1124 = vst.msk [vmem:[#allocation2 + $0x88] sm:$0x3] %vm1107, 0.0
  %1125 = vst.msk [vmem:[#allocation2 + $0x90] sm:$0xff] %vm445, 0.0
  %1126 = vst.msk [vmem:[#allocation2 + $0x98] sm:$0x3] %vm1107, 0.0
  %1127 = vst.msk [vmem:[#allocation2 + $0xa0] sm:$0xff] %vm445, 0.0
  %1128 = vst.msk [vmem:[#allocation2 + $0xa8] sm:$0x3] %vm1107, 0.0
  %1129 = vst.msk [vmem:[#allocation2 + $0xb0] sm:$0xff] %vm445, 0.0
  %1130 = vst.msk [vmem:[#allocation2 + $0xb8] sm:$0x3] %vm1107, 0.0
  %1131 = vst.msk [vmem:[#allocation2 + $0xc0] sm:$0xff] %vm445, 0.0
  %1132 = vst.msk [vmem:[#allocation2 + $0xc8] sm:$0x3] %vm1107, 0.0
  %1133 = vst.msk [vmem:[#allocation2 + $0xd0] sm:$0xff] %vm445, 0.0
  %1134 = vst.msk [vmem:[#allocation2 + $0xd8] sm:$0x3] %vm1107, 0.0
  %1135 = vst.msk [vmem:[#allocation2 + $0xe0] sm:$0xff] %vm445, 0.0
  %1136 = vst.msk [vmem:[#allocation2 + $0xe8] sm:$0x3] %vm1107, 0.0
  %1137 = vst.msk [vmem:[#allocation2 + $0xf0] sm:$0xff] %vm445, 0.0
  %1138 = vst.msk [vmem:[#allocation2 + $0xf8] sm:$0x3] %vm1107, 0.0
  %1139 = vst.msk [vmem:[#allocation2 + $0x100] sm:$0xff] %vm445, 0.0
  %1140 = vst.msk [vmem:[#allocation2 + $0x108] sm:$0x3] %vm1107, 0.0
  %1141 = vst.msk [vmem:[#allocation2 + $0x110] sm:$0xff] %vm445, 0.0
  %1142 = vst.msk [vmem:[#allocation2 + $0x118] sm:$0x3] %vm1107, 0.0
  %1143 = vst.msk [vmem:[#allocation2 + $0x120] sm:$0xff] %vm445, 0.0
  %1144 = vst.msk [vmem:[#allocation2 + $0x128] sm:$0x3] %vm1107, 0.0
  %1145 = vst.msk [vmem:[#allocation2 + $0x130] sm:$0xff] %vm445, 0.0
  %1146 = vst.msk [vmem:[#allocation2 + $0x138] sm:$0x3] %vm1107, 0.0
  %s1147 = scalar_lea.vmem [#allocation2], 16
  %1148 = vst.msk [vmem:[%s1147 + $0x1] sm:$0xff] %vm445, %v1090
  %1149 = vst.msk [vmem:[%s1147 + $0x11] sm:$0xff] %vm445, %v1091
  %1150 = vst.msk [vmem:[%s1147 + $0x21] sm:$0xff] %vm445, %v1092
  %1151 = vst.msk [vmem:[%s1147 + $0x31] sm:$0xff] %vm445, %v1093
  %1152 = vst.msk [vmem:[%s1147 + $0x41] sm:$0xff] %vm445, %v1094
  %1153 = vst.msk [vmem:[%s1147 + $0x51] sm:$0xff] %vm445, %v1095
  %1154 = vst.msk [vmem:[%s1147 + $0x61] sm:$0xff] %vm445, %v1096
  %1155 = vst.msk [vmem:[%s1147 + $0x71] sm:$0xff] %vm445, %v1097
  %1156 = vst.msk [vmem:[%s1147 + $0xa1] sm:$0xff] %vm445, %v1098
  %1157 = vst.msk [vmem:[%s1147 + $0xb1] sm:$0xff] %vm445, %v1099
  %1158 = vst.msk [vmem:[%s1147 + $0xc1] sm:$0xff] %vm445, %v1100
  %1159 = vst.msk [vmem:[%s1147 + $0xd1] sm:$0xff] %vm445, %v1101
  %1160 = vst.msk [vmem:[%s1147 + $0xe1] sm:$0xff] %vm445, %v1102
  %1161 = vst.msk [vmem:[%s1147 + $0xf1] sm:$0xff] %vm445, %v1103
  %1162 = vst.msk [vmem:[%s1147 + $0x101] sm:$0xff] %vm445, %v1104
  %1163 = vst.msk [vmem:[%s1147 + $0x111] sm:$0xff] %vm445, %v1105
  %v1164 = vld [vmem:[#allocation2] sm:$0xff]
  %v1165 = vld [vmem:[#allocation2 + $0x10] sm:$0xff]
  %v1166 = vld [vmem:[#allocation2 + $0x20] sm:$0xff]
  %v1167 = vld [vmem:[#allocation2 + $0x30] sm:$0xff]
  %v1168 = vld [vmem:[#allocation2 + $0x40] sm:$0xff]
  %v1169 = vld [vmem:[#allocation2 + $0x50] sm:$0xff]
  %v1170 = vld [vmem:[#allocation2 + $0x60] sm:$0xff]
  %v1171 = vld [vmem:[#allocation2 + $0x70] sm:$0xff]
  %v1172 = vld [vmem:[#allocation2 + $0xa0] sm:$0xff]
  %v1173 = vld [vmem:[#allocation2 + $0xb0] sm:$0xff]
  %v1174 = vld [vmem:[#allocation2 + $0xc0] sm:$0xff]
  %v1175 = vld [vmem:[#allocation2 + $0xd0] sm:$0xff]
  %v1176 = vld [vmem:[#allocation2 + $0xe0] sm:$0xff]
  %v1177 = vld [vmem:[#allocation2 + $0xf0] sm:$0xff]
  %v1178 = vld [vmem:[#allocation2 + $0x100] sm:$0xff]
  %v1179 = vld [vmem:[#allocation2 + $0x110] sm:$0xff]
  %v1180 = vld [vmem:[#allocation2 + $0x1] sm:$0xff]
  %v1181 = vld [vmem:[#allocation2 + $0x11] sm:$0xff]
  %v1182 = vld [vmem:[#allocation2 + $0x21] sm:$0xff]
  %v1183 = vld [vmem:[#allocation2 + $0x31] sm:$0xff]
  %v1184 = vld [vmem:[#allocation2 + $0x41] sm:$0xff]
  %v1185 = vld [vmem:[#allocation2 + $0x51] sm:$0xff]
  %v1186 = vld [vmem:[#allocation2 + $0x61] sm:$0xff]
  %v1187 = vld [vmem:[#allocation2 + $0x71] sm:$0xff]
  %v1188 = vld [vmem:[#allocation2 + $0xa1] sm:$0xff]
  %v1189 = vld [vmem:[#allocation2 + $0xb1] sm:$0xff]
  %v1190 = vld [vmem:[#allocation2 + $0xc1] sm:$0xff]
  %v1191 = vld [vmem:[#allocation2 + $0xd1] sm:$0xff]
  %v1192 = vld [vmem:[#allocation2 + $0xe1] sm:$0xff]
  %v1193 = vld [vmem:[#allocation2 + $0xf1] sm:$0xff]
  %v1194 = vld [vmem:[#allocation2 + $0x101] sm:$0xff]
  %v1195 = vld [vmem:[#allocation2 + $0x111] sm:$0xff]
  %v1196 = vld [vmem:[#allocation2 + $0x2] sm:$0xff]
  %v1197 = vld [vmem:[#allocation2 + $0x12] sm:$0xff]
  %v1198 = vld [vmem:[#allocation2 + $0x22] sm:$0xff]
  %v1199 = vld [vmem:[#allocation2 + $0x32] sm:$0xff]
  %v1200 = vld [vmem:[#allocation2 + $0x42] sm:$0xff]
  %v1201 = vld [vmem:[#allocation2 + $0x52] sm:$0xff]
  %v1202 = vld [vmem:[#allocation2 + $0x62] sm:$0xff]
  %v1203 = vld [vmem:[#allocation2 + $0x72] sm:$0xff]
  %v1204 = vld [vmem:[#allocation2 + $0xa2] sm:$0xff]
  %v1205 = vld [vmem:[#allocation2 + $0xb2] sm:$0xff]
  %v1206 = vld [vmem:[#allocation2 + $0xc2] sm:$0xff]
  %v1207 = vld [vmem:[#allocation2 + $0xd2] sm:$0xff]
  %v1208 = vld [vmem:[#allocation2 + $0xe2] sm:$0xff]
  %v1209 = vld [vmem:[#allocation2 + $0xf2] sm:$0xff]
  %v1210 = vld [vmem:[#allocation2 + $0x102] sm:$0xff]
  %v1211 = vld [vmem:[#allocation2 + $0x112] sm:$0xff]
  %v1212 = vld [vmem:[%s1147] sm:$0xff]
  %v1213 = vld [vmem:[%s1147 + $0x10] sm:$0xff]
  %v1214 = vld [vmem:[%s1147 + $0x20] sm:$0xff]
  %v1215 = vld [vmem:[%s1147 + $0x30] sm:$0xff]
  %v1216 = vld [vmem:[%s1147 + $0x40] sm:$0xff]
  %v1217 = vld [vmem:[%s1147 + $0x50] sm:$0xff]
  %v1218 = vld [vmem:[%s1147 + $0x60] sm:$0xff]
  %v1219 = vld [vmem:[%s1147 + $0x70] sm:$0xff]
  %v1220 = vld [vmem:[%s1147 + $0xa0] sm:$0xff]
  %v1221 = vld [vmem:[%s1147 + $0xb0] sm:$0xff]
  %v1222 = vld [vmem:[%s1147 + $0xc0] sm:$0xff]
  %v1223 = vld [vmem:[%s1147 + $0xd0] sm:$0xff]
  %v1224 = vld [vmem:[%s1147 + $0xe0] sm:$0xff]
  %v1225 = vld [vmem:[%s1147 + $0xf0] sm:$0xff]
  %v1226 = vld [vmem:[%s1147 + $0x100] sm:$0xff]
  %v1227 = vld [vmem:[%s1147 + $0x110] sm:$0xff]
  %v1228 = vld [vmem:[%s1147 + $0x1] sm:$0xff]
  %v1229 = vld [vmem:[%s1147 + $0x11] sm:$0xff]
  %v1230 = vld [vmem:[%s1147 + $0x21] sm:$0xff]
  %v1231 = vld [vmem:[%s1147 + $0x31] sm:$0xff]
  %v1232 = vld [vmem:[%s1147 + $0x41] sm:$0xff]
  %v1233 = vld [vmem:[%s1147 + $0x51] sm:$0xff]
  %v1234 = vld [vmem:[%s1147 + $0x61] sm:$0xff]
  %v1235 = vld [vmem:[%s1147 + $0x71] sm:$0xff]
  %v1236 = vld [vmem:[%s1147 + $0xa1] sm:$0xff]
  %v1237 = vld [vmem:[%s1147 + $0xb1] sm:$0xff]
  %v1238 = vld [vmem:[%s1147 + $0xc1] sm:$0xff]
  %v1239 = vld [vmem:[%s1147 + $0xd1] sm:$0xff]
  %v1240 = vld [vmem:[%s1147 + $0xe1] sm:$0xff]
  %v1241 = vld [vmem:[%s1147 + $0xf1] sm:$0xff]
  %v1242 = vld [vmem:[%s1147 + $0x101] sm:$0xff]
  %v1243 = vld [vmem:[%s1147 + $0x111] sm:$0xff]
  %v1244 = vld [vmem:[%s1147 + $0x2] sm:$0xff]
  %v1245 = vld [vmem:[%s1147 + $0x12] sm:$0xff]
  %v1246 = vld [vmem:[%s1147 + $0x22] sm:$0xff]
  %v1247 = vld [vmem:[%s1147 + $0x32] sm:$0xff]
  %v1248 = vld [vmem:[%s1147 + $0x42] sm:$0xff]
  %v1249 = vld [vmem:[%s1147 + $0x52] sm:$0xff]
  %v1250 = vld [vmem:[%s1147 + $0x62] sm:$0xff]
  %v1251 = vld [vmem:[%s1147 + $0x72] sm:$0xff]
  %v1252 = vld [vmem:[%s1147 + $0xa2] sm:$0xff]
  %v1253 = vld [vmem:[%s1147 + $0xb2] sm:$0xff]
  %v1254 = vld [vmem:[%s1147 + $0xc2] sm:$0xff]
  %v1255 = vld [vmem:[%s1147 + $0xd2] sm:$0xff]
  %v1256 = vld [vmem:[%s1147 + $0xe2] sm:$0xff]
  %v1257 = vld [vmem:[%s1147 + $0xf2] sm:$0xff]
  %v1258 = vld [vmem:[%s1147 + $0x102] sm:$0xff]
  %v1259 = vld [vmem:[%s1147 + $0x112] sm:$0xff]
  %s1260 = scalar_lea.vmem [#allocation2], 32
  %v1261 = vld [vmem:[%s1260] sm:$0xff]
  %v1262 = vld [vmem:[%s1260 + $0x10] sm:$0xff]
  %v1263 = vld [vmem:[%s1260 + $0x20] sm:$0xff]
  %v1264 = vld [vmem:[%s1260 + $0x30] sm:$0xff]
  %v1265 = vld [vmem:[%s1260 + $0x40] sm:$0xff]
  %v1266 = vld [vmem:[%s1260 + $0x50] sm:$0xff]
  %v1267 = vld [vmem:[%s1260 + $0x60] sm:$0xff]
  %v1268 = vld [vmem:[%s1260 + $0x70] sm:$0xff]
  %v1269 = vld [vmem:[%s1260 + $0xa0] sm:$0xff]
  %v1270 = vld [vmem:[%s1260 + $0xb0] sm:$0xff]
  %v1271 = vld [vmem:[%s1260 + $0xc0] sm:$0xff]
  %v1272 = vld [vmem:[%s1260 + $0xd0] sm:$0xff]
  %v1273 = vld [vmem:[%s1260 + $0xe0] sm:$0xff]
  %v1274 = vld [vmem:[%s1260 + $0xf0] sm:$0xff]
  %v1275 = vld [vmem:[%s1260 + $0x100] sm:$0xff]
  %v1276 = vld [vmem:[%s1260 + $0x110] sm:$0xff]
  %v1277 = vld [vmem:[%s1260 + $0x1] sm:$0xff]
  %v1278 = vld [vmem:[%s1260 + $0x11] sm:$0xff]
  %v1279 = vld [vmem:[%s1260 + $0x21] sm:$0xff]
  %v1280 = vld [vmem:[%s1260 + $0x31] sm:$0xff]
  %v1281 = vld [vmem:[%s1260 + $0x41] sm:$0xff]
  %v1282 = vld [vmem:[%s1260 + $0x51] sm:$0xff]
  %v1283 = vld [vmem:[%s1260 + $0x61] sm:$0xff]
  %v1284 = vld [vmem:[%s1260 + $0x71] sm:$0xff]
  %v1285 = vld [vmem:[%s1260 + $0xa1] sm:$0xff]
  %v1286 = vld [vmem:[%s1260 + $0xb1] sm:$0xff]
  %v1287 = vld [vmem:[%s1260 + $0xc1] sm:$0xff]
  %v1288 = vld [vmem:[%s1260 + $0xd1] sm:$0xff]
  %v1289 = vld [vmem:[%s1260 + $0xe1] sm:$0xff]
  %v1290 = vld [vmem:[%s1260 + $0xf1] sm:$0xff]
  %v1291 = vld [vmem:[%s1260 + $0x101] sm:$0xff]
  %v1292 = vld [vmem:[%s1260 + $0x111] sm:$0xff]
  %v1293 = vld [vmem:[%s1260 + $0x2] sm:$0xff]
  %v1294 = vld [vmem:[%s1260 + $0x12] sm:$0xff]
  %v1295 = vld [vmem:[%s1260 + $0x22] sm:$0xff]
  %v1296 = vld [vmem:[%s1260 + $0x32] sm:$0xff]
  %v1297 = vld [vmem:[%s1260 + $0x42] sm:$0xff]
  %v1298 = vld [vmem:[%s1260 + $0x52] sm:$0xff]
  %v1299 = vld [vmem:[%s1260 + $0x62] sm:$0xff]
  %v1300 = vld [vmem:[%s1260 + $0x72] sm:$0xff]
  %v1301 = vld [vmem:[%s1260 + $0xa2] sm:$0xff]
  %v1302 = vld [vmem:[%s1260 + $0xb2] sm:$0xff]
  %v1303 = vld [vmem:[%s1260 + $0xc2] sm:$0xff]
  %v1304 = vld [vmem:[%s1260 + $0xd2] sm:$0xff]
  %v1305 = vld [vmem:[%s1260 + $0xe2] sm:$0xff]
  %v1306 = vld [vmem:[%s1260 + $0xf2] sm:$0xff]
  %v1307 = vld [vmem:[%s1260 + $0x102] sm:$0xff]
  %v1308 = vld [vmem:[%s1260 + $0x112] sm:$0xff]
  %1325 = vrot.lane.b32.xlu0 %v1180, 32
  %v1326 = vpop.permute.xlu0 %1325
  %1327 = vrot.lane.b32.xlu0 %v1181, 32
  %v1328 = vpop.permute.xlu0 %1327
  %1329 = vrot.lane.b32.xlu0 %v1182, 32
  %v1330 = vpop.permute.xlu0 %1329
  %1331 = vrot.lane.b32.xlu0 %v1183, 32
  %v1332 = vpop.permute.xlu0 %1331
  %1333 = vrot.lane.b32.xlu0 %v1184, 32
  %v1334 = vpop.permute.xlu0 %1333
  %1335 = vrot.lane.b32.xlu0 %v1185, 32
  %v1336 = vpop.permute.xlu0 %1335
  %1337 = vrot.lane.b32.xlu0 %v1186, 32
  %v1338 = vpop.permute.xlu0 %1337
  %1339 = vrot.lane.b32.xlu0 %v1187, 32
  %v1340 = vpop.permute.xlu0 %1339
  %1341 = vrot.lane.b32.xlu0 %v1188, 32
  %v1342 = vpop.permute.xlu0 %1341
  %1343 = vrot.lane.b32.xlu0 %v1189, 32
  %v1344 = vpop.permute.xlu0 %1343
  %1345 = vrot.lane.b32.xlu0 %v1190, 32
  %v1346 = vpop.permute.xlu0 %1345
  %1347 = vrot.lane.b32.xlu0 %v1191, 32
  %v1348 = vpop.permute.xlu0 %1347
  %1349 = vrot.lane.b32.xlu0 %v1192, 32
  %v1350 = vpop.permute.xlu0 %1349
  %1351 = vrot.lane.b32.xlu0 %v1193, 32
  %v1352 = vpop.permute.xlu0 %1351
  %1353 = vrot.lane.b32.xlu0 %v1194, 32
  %v1354 = vpop.permute.xlu0 %1353
  %1355 = vrot.lane.b32.xlu0 %v1195, 32
  %v1356 = vpop.permute.xlu0 %1355
  %1389 = vrot.lane.b32.xlu0 %v1196, 64
  %v1390 = vpop.permute.xlu0 %1389
  %1391 = vrot.lane.b32.xlu0 %v1197, 64
  %v1392 = vpop.permute.xlu0 %1391
  %1393 = vrot.lane.b32.xlu0 %v1198, 64
  %v1394 = vpop.permute.xlu0 %1393
  %1395 = vrot.lane.b32.xlu0 %v1199, 64
  %v1396 = vpop.permute.xlu0 %1395
  %1397 = vrot.lane.b32.xlu0 %v1200, 64
  %v1398 = vpop.permute.xlu0 %1397
  %1399 = vrot.lane.b32.xlu0 %v1201, 64
  %v1400 = vpop.permute.xlu0 %1399
  %1401 = vrot.lane.b32.xlu0 %v1202, 64
  %v1402 = vpop.permute.xlu0 %1401
  %1403 = vrot.lane.b32.xlu0 %v1203, 64
  %v1404 = vpop.permute.xlu0 %1403
  %1405 = vrot.lane.b32.xlu0 %v1204, 64
  %v1406 = vpop.permute.xlu0 %1405
  %1407 = vrot.lane.b32.xlu0 %v1205, 64
  %v1408 = vpop.permute.xlu0 %1407
  %1409 = vrot.lane.b32.xlu0 %v1206, 64
  %v1410 = vpop.permute.xlu0 %1409
  %1411 = vrot.lane.b32.xlu0 %v1207, 64
  %v1412 = vpop.permute.xlu0 %1411
  %1413 = vrot.lane.b32.xlu0 %v1208, 64
  %v1414 = vpop.permute.xlu0 %1413
  %1415 = vrot.lane.b32.xlu0 %v1209, 64
  %v1416 = vpop.permute.xlu0 %1415
  %1417 = vrot.lane.b32.xlu0 %v1210, 64
  %v1418 = vpop.permute.xlu0 %1417
  %1419 = vrot.lane.b32.xlu0 %v1211, 64
  %v1420 = vpop.permute.xlu0 %1419
  %1453 = vrot.lane.b32.xlu0 %v1212, 96
  %v1454 = vpop.permute.xlu0 %1453
  %1455 = vrot.lane.b32.xlu0 %v1213, 96
  %v1456 = vpop.permute.xlu0 %1455
  %1457 = vrot.lane.b32.xlu0 %v1214, 96
  %v1458 = vpop.permute.xlu0 %1457
  %1459 = vrot.lane.b32.xlu0 %v1215, 96
  %v1460 = vpop.permute.xlu0 %1459
  %1461 = vrot.lane.b32.xlu0 %v1216, 96
  %v1462 = vpop.permute.xlu0 %1461
  %1463 = vrot.lane.b32.xlu0 %v1217, 96
  %v1464 = vpop.permute.xlu0 %1463
  %1465 = vrot.lane.b32.xlu0 %v1218, 96
  %v1466 = vpop.permute.xlu0 %1465
  %1467 = vrot.lane.b32.xlu0 %v1219, 96
  %v1468 = vpop.permute.xlu0 %1467
  %1469 = vrot.lane.b32.xlu0 %v1220, 96
  %v1470 = vpop.permute.xlu0 %1469
  %1471 = vrot.lane.b32.xlu0 %v1221, 96
  %v1472 = vpop.permute.xlu0 %1471
  %1473 = vrot.lane.b32.xlu0 %v1222, 96
  %v1474 = vpop.permute.xlu0 %1473
  %1475 = vrot.lane.b32.xlu0 %v1223, 96
  %v1476 = vpop.permute.xlu0 %1475
  %1477 = vrot.lane.b32.xlu0 %v1224, 96
  %v1478 = vpop.permute.xlu0 %1477
  %1479 = vrot.lane.b32.xlu0 %v1225, 96
  %v1480 = vpop.permute.xlu0 %1479
  %1481 = vrot.lane.b32.xlu0 %v1226, 96
  %v1482 = vpop.permute.xlu0 %1481
  %1483 = vrot.lane.b32.xlu0 %v1227, 96
  %v1484 = vpop.permute.xlu0 %1483
  %1517 = vrot.lane.b32.xlu0 %v1244, 32
  %v1518 = vpop.permute.xlu0 %1517
  %1519 = vrot.lane.b32.xlu0 %v1245, 32
  %v1520 = vpop.permute.xlu0 %1519
  %1521 = vrot.lane.b32.xlu0 %v1246, 32
  %v1522 = vpop.permute.xlu0 %1521
  %1523 = vrot.lane.b32.xlu0 %v1247, 32
  %v1524 = vpop.permute.xlu0 %1523
  %1525 = vrot.lane.b32.xlu0 %v1248, 32
  %v1526 = vpop.permute.xlu0 %1525
  %1527 = vrot.lane.b32.xlu0 %v1249, 32
  %v1528 = vpop.permute.xlu0 %1527
  %1529 = vrot.lane.b32.xlu0 %v1250, 32
  %v1530 = vpop.permute.xlu0 %1529
  %1531 = vrot.lane.b32.xlu0 %v1251, 32
  %v1532 = vpop.permute.xlu0 %1531
  %1533 = vrot.lane.b32.xlu0 %v1252, 32
  %v1534 = vpop.permute.xlu0 %1533
  %1535 = vrot.lane.b32.xlu0 %v1253, 32
  %v1536 = vpop.permute.xlu0 %1535
  %1537 = vrot.lane.b32.xlu0 %v1254, 32
  %v1538 = vpop.permute.xlu0 %1537
  %1539 = vrot.lane.b32.xlu0 %v1255, 32
  %v1540 = vpop.permute.xlu0 %1539
  %1541 = vrot.lane.b32.xlu0 %v1256, 32
  %v1542 = vpop.permute.xlu0 %1541
  %1543 = vrot.lane.b32.xlu0 %v1257, 32
  %v1544 = vpop.permute.xlu0 %1543
  %1545 = vrot.lane.b32.xlu0 %v1258, 32
  %v1546 = vpop.permute.xlu0 %1545
  %1547 = vrot.lane.b32.xlu0 %v1259, 32
  %v1548 = vpop.permute.xlu0 %1547
  %1581 = vrot.lane.b32.xlu0 %v1261, 64
  %v1582 = vpop.permute.xlu0 %1581
  %1583 = vrot.lane.b32.xlu0 %v1262, 64
  %v1584 = vpop.permute.xlu0 %1583
  %1585 = vrot.lane.b32.xlu0 %v1263, 64
  %v1586 = vpop.permute.xlu0 %1585
  %1587 = vrot.lane.b32.xlu0 %v1264, 64
  %v1588 = vpop.permute.xlu0 %1587
  %1589 = vrot.lane.b32.xlu0 %v1265, 64
  %v1590 = vpop.permute.xlu0 %1589
  %1591 = vrot.lane.b32.xlu0 %v1266, 64
  %v1592 = vpop.permute.xlu0 %1591
  %1593 = vrot.lane.b32.xlu0 %v1267, 64
  %v1594 = vpop.permute.xlu0 %1593
  %1595 = vrot.lane.b32.xlu0 %v1268, 64
  %v1596 = vpop.permute.xlu0 %1595
  %1597 = vrot.lane.b32.xlu0 %v1269, 64
  %v1598 = vpop.permute.xlu0 %1597
  %1599 = vrot.lane.b32.xlu0 %v1270, 64
  %v1600 = vpop.permute.xlu0 %1599
  %1601 = vrot.lane.b32.xlu0 %v1271, 64
  %v1602 = vpop.permute.xlu0 %1601
  %1603 = vrot.lane.b32.xlu0 %v1272, 64
  %v1604 = vpop.permute.xlu0 %1603
  %1605 = vrot.lane.b32.xlu0 %v1273, 64
  %v1606 = vpop.permute.xlu0 %1605
  %1607 = vrot.lane.b32.xlu0 %v1274, 64
  %v1608 = vpop.permute.xlu0 %1607
  %1609 = vrot.lane.b32.xlu0 %v1275, 64
  %v1610 = vpop.permute.xlu0 %1609
  %1611 = vrot.lane.b32.xlu0 %v1276, 64
  %v1612 = vpop.permute.xlu0 %1611
  %1645 = vrot.lane.b32.xlu0 %v1277, 96
  %v1646 = vpop.permute.xlu0 %1645
  %1647 = vrot.lane.b32.xlu0 %v1278, 96
  %v1648 = vpop.permute.xlu0 %1647
  %1649 = vrot.lane.b32.xlu0 %v1279, 96
  %v1650 = vpop.permute.xlu0 %1649
  %1651 = vrot.lane.b32.xlu0 %v1280, 96
  %v1652 = vpop.permute.xlu0 %1651
  %1653 = vrot.lane.b32.xlu0 %v1281, 96
  %v1654 = vpop.permute.xlu0 %1653
  %1655 = vrot.lane.b32.xlu0 %v1282, 96
  %v1656 = vpop.permute.xlu0 %1655
  %1657 = vrot.lane.b32.xlu0 %v1283, 96
  %v1658 = vpop.permute.xlu0 %1657
  %1659 = vrot.lane.b32.xlu0 %v1284, 96
  %v1660 = vpop.permute.xlu0 %1659
  %1661 = vrot.lane.b32.xlu0 %v1285, 96
  %v1662 = vpop.permute.xlu0 %1661
  %1663 = vrot.lane.b32.xlu0 %v1286, 96
  %v1664 = vpop.permute.xlu0 %1663
  %1665 = vrot.lane.b32.xlu0 %v1287, 96
  %v1666 = vpop.permute.xlu0 %1665
  %1667 = vrot.lane.b32.xlu0 %v1288, 96
  %v1668 = vpop.permute.xlu0 %1667
  %1669 = vrot.lane.b32.xlu0 %v1289, 96
  %v1670 = vpop.permute.xlu0 %1669
  %1671 = vrot.lane.b32.xlu0 %v1290, 96
  %v1672 = vpop.permute.xlu0 %1671
  %1673 = vrot.lane.b32.xlu0 %v1291, 96
  %v1674 = vpop.permute.xlu0 %1673
  %1675 = vrot.lane.b32.xlu0 %v1292, 96
  %v1676 = vpop.permute.xlu0 %1675
  %v1693 = vsel %vm445, %v1164, %v1326
  %v1694 = vsel %vm445, %v1165, %v1328
  %v1695 = vsel %vm445, %v1166, %v1330
  %v1696 = vsel %vm445, %v1167, %v1332
  %v1697 = vsel %vm445, %v1168, %v1334
  %v1698 = vsel %vm445, %v1169, %v1336
  %v1699 = vsel %vm445, %v1170, %v1338
  %v1700 = vsel %vm445, %v1171, %v1340
  %v1701 = vsel %vm445, %v1172, %v1342
  %v1702 = vsel %vm445, %v1173, %v1344
  %v1703 = vsel %vm445, %v1174, %v1346
  %v1704 = vsel %vm445, %v1175, %v1348
  %v1705 = vsel %vm445, %v1176, %v1350
  %v1706 = vsel %vm445, %v1177, %v1352
  %v1707 = vsel %vm445, %v1178, %v1354
  %v1708 = vsel %vm445, %v1179, %v1356
  %vm1709 = vcmask 523264
  %v1710 = vsel %vm1709, %v1693, %v1390
  %v1711 = vsel %vm1709, %v1694, %v1392
  %v1712 = vsel %vm1709, %v1695, %v1394
  %v1713 = vsel %vm1709, %v1696, %v1396
  %v1714 = vsel %vm1709, %v1697, %v1398
  %v1715 = vsel %vm1709, %v1698, %v1400
  %v1716 = vsel %vm1709, %v1699, %v1402
  %v1717 = vsel %vm1709, %v1700, %v1404
  %v1718 = vsel %vm1709, %v1701, %v1406
  %v1719 = vsel %vm1709, %v1702, %v1408
  %v1720 = vsel %vm1709, %v1703, %v1410
  %v1721 = vsel %vm1709, %v1704, %v1412
  %v1722 = vsel %vm1709, %v1705, %v1414
  %v1723 = vsel %vm1709, %v1706, %v1416
  %v1724 = vsel %vm1709, %v1707, %v1418
  %v1725 = vsel %vm1709, %v1708, %v1420
  %vm1726 = vcmask 785408
  %v1727 = vsel %vm1726, %v1710, %v1454
  %v1728 = vsel %vm1726, %v1711, %v1456
  %v1729 = vsel %vm1726, %v1712, %v1458
  %v1730 = vsel %vm1726, %v1713, %v1460
  %v1731 = vsel %vm1726, %v1714, %v1462
  %v1732 = vsel %vm1726, %v1715, %v1464
  %v1733 = vsel %vm1726, %v1716, %v1466
  %v1734 = vsel %vm1726, %v1717, %v1468
  %v1735 = vsel %vm1726, %v1718, %v1470
  %v1736 = vsel %vm1726, %v1719, %v1472
  %v1737 = vsel %vm1726, %v1720, %v1474
  %v1738 = vsel %vm1726, %v1721, %v1476
  %v1739 = vsel %vm1726, %v1722, %v1478
  %v1740 = vsel %vm1726, %v1723, %v1480
  %v1741 = vsel %vm1726, %v1724, %v1482
  %v1742 = vsel %vm1726, %v1725, %v1484
  %v1743 = vsel %vm445, %v1228, %v1518
  %v1744 = vsel %vm445, %v1229, %v1520
  %v1745 = vsel %vm445, %v1230, %v1522
  %v1746 = vsel %vm445, %v1231, %v1524
  %v1747 = vsel %vm445, %v1232, %v1526
  %v1748 = vsel %vm445, %v1233, %v1528
  %v1749 = vsel %vm445, %v1234, %v1530
  %v1750 = vsel %vm445, %v1235, %v1532
  %v1751 = vsel %vm445, %v1236, %v1534
  %v1752 = vsel %vm445, %v1237, %v1536
  %v1753 = vsel %vm445, %v1238, %v1538
  %v1754 = vsel %vm445, %v1239, %v1540
  %v1755 = vsel %vm445, %v1240, %v1542
  %v1756 = vsel %vm445, %v1241, %v1544
  %v1757 = vsel %vm445, %v1242, %v1546
  %v1758 = vsel %vm445, %v1243, %v1548
  %v1759 = vsel %vm1709, %v1743, %v1582
  %v1760 = vsel %vm1709, %v1744, %v1584
  %v1761 = vsel %vm1709, %v1745, %v1586
  %v1762 = vsel %vm1709, %v1746, %v1588
  %v1763 = vsel %vm1709, %v1747, %v1590
  %v1764 = vsel %vm1709, %v1748, %v1592
  %v1765 = vsel %vm1709, %v1749, %v1594
  %v1766 = vsel %vm1709, %v1750, %v1596
  %v1767 = vsel %vm1709, %v1751, %v1598
  %v1768 = vsel %vm1709, %v1752, %v1600
  %v1769 = vsel %vm1709, %v1753, %v1602
  %v1770 = vsel %vm1709, %v1754, %v1604
  %v1771 = vsel %vm1709, %v1755, %v1606
  %v1772 = vsel %vm1709, %v1756, %v1608
  %v1773 = vsel %vm1709, %v1757, %v1610
  %v1774 = vsel %vm1709, %v1758, %v1612
  %v1775 = vsel %vm1726, %v1759, %v1646
  %v1776 = vsel %vm1726, %v1760, %v1648
  %v1777 = vsel %vm1726, %v1761, %v1650
  %v1778 = vsel %vm1726, %v1762, %v1652
  %v1779 = vsel %vm1726, %v1763, %v1654
  %v1780 = vsel %vm1726, %v1764, %v1656
  %v1781 = vsel %vm1726, %v1765, %v1658
  %v1782 = vsel %vm1726, %v1766, %v1660
  %v1783 = vsel %vm1726, %v1767, %v1662
  %v1784 = vsel %vm1726, %v1768, %v1664
  %v1785 = vsel %vm1726, %v1769, %v1666
  %v1786 = vsel %vm1726, %v1770, %v1668
  %v1787 = vsel %vm1726, %v1771, %v1670
  %v1788 = vsel %vm1726, %v1772, %v1672
  %v1789 = vsel %vm1726, %v1773, %v1674
  %v1790 = vsel %vm1726, %v1774, %v1676
  %v1791 = vpack.c.bf16 %v1728, %v1727
  %v1792 = vpack.c.bf16 %v1776, %v1775
  %v1793 = vpack.c.bf16 %v1294, %v1293
  %v1794 = vpack.c.bf16 %v1730, %v1729
  %v1795 = vpack.c.bf16 %v1778, %v1777
  %v1796 = vpack.c.bf16 %v1296, %v1295
  %v1797 = vpack.c.bf16 %v1732, %v1731
  %v1798 = vpack.c.bf16 %v1780, %v1779
  %v1799 = vpack.c.bf16 %v1298, %v1297
  %v1800 = vpack.c.bf16 %v1734, %v1733
  %v1801 = vpack.c.bf16 %v1782, %v1781
  %v1802 = vpack.c.bf16 %v1300, %v1299
  %v1803 = vpack.c.bf16 %v1736, %v1735
  %v1804 = vpack.c.bf16 %v1784, %v1783
  %v1805 = vpack.c.bf16 %v1302, %v1301
  %v1806 = vpack.c.bf16 %v1738, %v1737
  %v1807 = vpack.c.bf16 %v1786, %v1785
  %v1808 = vpack.c.bf16 %v1304, %v1303
  %v1809 = vpack.c.bf16 %v1740, %v1739
  %v1810 = vpack.c.bf16 %v1788, %v1787
  %v1811 = vpack.c.bf16 %v1306, %v1305
  %v1812 = vpack.c.bf16 %v1742, %v1741
  %v1813 = vpack.c.bf16 %v1790, %v1789
  %v1814 = vpack.c.bf16 %v1308, %v1307
  %v1815 = vld [vmem:[%s4] sm:$0xf]
  %v1816 = vld [vmem:[%s4 + $0x4] sm:$0xf]
  %v1817 = vld [vmem:[%s4 + $0x8] sm:$0xf]
  %v1818 = vld [vmem:[%s4 + $0xc] sm:$0xf]
  %v1819 = vld [vmem:[%s4 + $0x10] sm:$0xf]
  %v1820 = vld [vmem:[%s4 + $0x14] sm:$0xf]
  %v1821 = vld [vmem:[%s4 + $0x18] sm:$0xf]
  %v1822 = vld [vmem:[%s4 + $0x1c] sm:$0xf]
  %v1823 = vld [vmem:[%s4 + $0x20] sm:$0xf]
  %v1824 = vld [vmem:[%s4 + $0x24] sm:$0xf]
  %v1825 = vld [vmem:[%s4 + $0x28] sm:$0xf]
  %v1826 = vld [vmem:[%s4 + $0x2c] sm:$0xf]
  %v1827 = vld [vmem:[%s4 + $0x30] sm:$0xf]
  %v1828 = vld [vmem:[%s4 + $0x34] sm:$0xf]
  %v1829 = vld [vmem:[%s4 + $0x38] sm:$0xf]
  %v1830 = vld [vmem:[%s4 + $0x3c] sm:$0xf]
  %v1831 = vld [vmem:[%s4 + $0x40] sm:$0xf]
  %v1832 = vld [vmem:[%s4 + $0x44] sm:$0xf]
  %v1833 = vld [vmem:[%s4 + $0x48] sm:$0xf]
  %v1834 = vld [vmem:[%s4 + $0x4c] sm:$0xf]
  %v1835 = vld [vmem:[%s4 + $0x50] sm:$0xf]
  %v1836 = vld [vmem:[%s4 + $0x54] sm:$0xf]
  %v1837 = vld [vmem:[%s4 + $0x58] sm:$0xf]
  %v1838 = vld [vmem:[%s4 + $0x5c] sm:$0xf]
  %v1839 = vld [vmem:[%s4 + $0x60] sm:$0xf]
  %v1840 = vld [vmem:[%s4 + $0x64] sm:$0xf]
  %v1841 = vld [vmem:[%s4 + $0x68] sm:$0xf]
  %v1842 = vld [vmem:[%s4 + $0x6c] sm:$0xf]
  %v1843 = vld [vmem:[%s4 + $0x70] sm:$0xf]
  %v1844 = vld [vmem:[%s4 + $0x74] sm:$0xf]
  %v1845 = vld [vmem:[%s4 + $0x78] sm:$0xf]
  %v1846 = vld [vmem:[%s4 + $0x7c] sm:$0xf]
  %v1847 = vld [vmem:[%s4 + $0x80] sm:$0xf]
  %v1848 = vld [vmem:[%s4 + $0x84] sm:$0xf]
  %v1849 = vld [vmem:[%s4 + $0x88] sm:$0xf]
  %v1850 = vld [vmem:[%s4 + $0x8c] sm:$0xf]
  %v1887 = vunpack.c.l.b16 %v1815
  %v1888 = vunpack.c.l.b16 %v1816
  %v1889 = vunpack.c.l.b16 %v1817
  %v1890 = vunpack.c.l.b16 %v1818
  %v1891 = vunpack.c.l.b16 %v1819
  %v1892 = vunpack.c.l.b16 %v1820
  %v1893 = vunpack.c.l.b16 %v1821
  %v1894 = vunpack.c.l.b16 %v1822
  %v1895 = vunpack.c.l.b16 %v1823
  %v1896 = vunpack.c.l.b16 %v1824
  %v1897 = vunpack.c.l.b16 %v1825
  %v1898 = vunpack.c.l.b16 %v1826
  %v1899 = vunpack.c.l.b16 %v1827
  %v1900 = vunpack.c.l.b16 %v1828
  %v1901 = vunpack.c.l.b16 %v1829
  %v1902 = vunpack.c.l.b16 %v1830
  %v1903 = vunpack.c.l.b16 %v1831
  %v1904 = vunpack.c.l.b16 %v1832
  %v1905 = vunpack.c.l.b16 %v1833
  %v1906 = vunpack.c.l.b16 %v1834
  %v1907 = vunpack.c.l.b16 %v1835
  %v1908 = vunpack.c.l.b16 %v1836
  %v1909 = vunpack.c.l.b16 %v1837
  %v1910 = vunpack.c.l.b16 %v1838
  %v1911 = vunpack.c.l.b16 %v1839
  %v1912 = vunpack.c.l.b16 %v1840
  %v1913 = vunpack.c.l.b16 %v1841
  %v1914 = vunpack.c.l.b16 %v1842
  %v1915 = vunpack.c.l.b16 %v1843
  %v1916 = vunpack.c.l.b16 %v1844
  %v1917 = vunpack.c.l.b16 %v1845
  %v1918 = vunpack.c.l.b16 %v1846
  %v1919 = vunpack.c.l.b16 %v1847
  %v1920 = vunpack.c.l.b16 %v1848
  %v1921 = vunpack.c.l.b16 %v1849
  %v1922 = vunpack.c.l.b16 %v1850
  %v1923 = vpack.c.b16 %v1888, %v1887
  %v1924 = vpack.c.b16 %v1890, %v1889
  %v1925 = vpack.c.b16 %v1892, %v1891
  %v1926 = vpack.c.b16 %v1894, %v1893
  %v1927 = vpack.c.b16 %v1896, %v1895
  %v1928 = vpack.c.b16 %v1898, %v1897
  %v1929 = vpack.c.b16 %v1900, %v1899
  %v1930 = vpack.c.b16 %v1902, %v1901
  %v1931 = vpack.c.b16 %v1904, %v1903
  %v1932 = vpack.c.b16 %v1906, %v1905
  %v1933 = vpack.c.b16 %v1908, %v1907
  %v1934 = vpack.c.b16 %v1910, %v1909
  %v1935 = vpack.c.b16 %v1912, %v1911
  %v1936 = vpack.c.b16 %v1914, %v1913
  %v1937 = vpack.c.b16 %v1916, %v1915
  %v1938 = vpack.c.b16 %v1918, %v1917
  %v1939 = vpack.c.b16 %v1920, %v1919
  %v1940 = vpack.c.b16 %v1922, %v1921
  %v1960 = vsel %vm445, %v1793, 0
  %v1963 = vsel %vm445, %v1796, 0
  %v1966 = vsel %vm445, %v1799, 0
  %v1969 = vsel %vm445, %v1802, 0
  %v1972 = vsel %vm445, %v1805, 0
  %v1975 = vsel %vm445, %v1808, 0
  %v1978 = vsel %vm445, %v1811, 0
  %v1981 = vsel %vm445, %v1814, 0
  %1983 = vmatprep.subr.bf16.mxu0 0
  %1984 = vmatpush1.bf16.msra.mxu0 %v1930
  %1985 = vmatprep.subr.bf16.mxu0 0
  %1986 = vmatpush1.bf16.msra.mxu0 %v1929
  %1987 = vmatprep.subr.bf16.mxu0 0
  %1988 = vmatpush1.bf16.msra.mxu0 %v1928
  %1989 = vmatprep.subr.bf16.mxu0 0
  %1990 = vmatpush1.bf16.msra.mxu0 %v1927
  %1991 = vmatprep.subr.bf16.mxu0 0
  %1992 = vmatpush1.bf16.msra.mxu0 %v1926
  %1993 = vmatprep.subr.bf16.mxu0 0
  %1994 = vmatpush1.bf16.msra.mxu0 %v1925
  %1995 = vmatprep.subr.bf16.mxu0 0
  %1996 = vmatpush1.bf16.msra.mxu0 %v1924
  %1997 = vmatprep.subr.bf16.mxu0 0
  %1998 = vmatpush1.bf16.msra.mxu0 %v1923
  %1999 = vmatprep.subr.bf16.mxu0 0
  %2000 = vmatpush2.bf16.msra.mxu0 %v1938
  %2001 = vmatprep.subr.bf16.mxu0 0
  %2002 = vmatpush2.bf16.msra.mxu0 %v1937
  %2003 = vmatprep.subr.bf16.mxu0 0
  %2004 = vmatpush2.bf16.msra.mxu0 %v1936
  %2005 = vmatprep.subr.bf16.mxu0 0
  %2006 = vmatpush2.bf16.msra.mxu0 %v1935
  %2007 = vmatprep.subr.bf16.mxu0 0
  %2008 = vmatpush2.bf16.msra.mxu0 %v1934
  %2009 = vmatprep.subr.bf16.mxu0 0
  %2010 = vmatpush2.bf16.msra.mxu0 %v1933
  %2011 = vmatprep.subr.bf16.mxu0 0
  %2012 = vmatpush2.bf16.msra.mxu0 %v1932
  %2013 = vmatprep.subr.bf16.mxu0 0
  %2014 = vmatpush2.bf16.msra.mxu0 %v1931
  %2015 = vmatprep.mubr.bf16.mxu0 %v1792
  %2016 = vmatmul.mubr.bf16.gmra.mxu0 %v1791
  %v2017 = vpop.f32.mrf.mxu0
  %v2018 = vadd.f32 0.0, %v2017
  %v2019 = vpop.f32.mrf.mxu0
  %v2020 = vpop.f32.mrf.mxu0
  %v2021 = vadd.f32 0.0, %v2020
  %v2022 = vpop.f32.mrf.mxu0
  %2023 = vmatprep.mubr.bf16.mxu0 %v1795
  %2024 = vmatmul.mubr.bf16.gmra.mxu0 %v1794
  %v2025 = vpop.f32.mrf.mxu0
  %v2026 = vadd.f32 0.0, %v2025
  %v2027 = vpop.f32.mrf.mxu0
  %v2028 = vpop.f32.mrf.mxu0
  %v2029 = vadd.f32 0.0, %v2028
  %v2030 = vpop.f32.mrf.mxu0
  %2031 = vmatprep.mubr.bf16.mxu0 %v1798
  %2032 = vmatmul.mubr.bf16.gmra.mxu0 %v1797
  %v2033 = vpop.f32.mrf.mxu0
  %v2034 = vadd.f32 0.0, %v2033
  %v2035 = vpop.f32.mrf.mxu0
  %v2036 = vpop.f32.mrf.mxu0
  %v2037 = vadd.f32 0.0, %v2036
  %v2038 = vpop.f32.mrf.mxu0
  %2039 = vmatprep.mubr.bf16.mxu0 %v1801
  %2040 = vmatmul.mubr.bf16.gmra.mxu0 %v1800
  %v2041 = vpop.f32.mrf.mxu0
  %v2042 = vadd.f32 0.0, %v2041
  %v2043 = vpop.f32.mrf.mxu0
  %v2044 = vpop.f32.mrf.mxu0
  %v2045 = vadd.f32 0.0, %v2044
  %v2046 = vpop.f32.mrf.mxu0
  %2047 = vmatprep.mubr.bf16.mxu0 %v1804
  %2048 = vmatmul.mubr.bf16.gmra.mxu0 %v1803
  %v2049 = vpop.f32.mrf.mxu0
  %v2050 = vadd.f32 0.0, %v2049
  %v2051 = vpop.f32.mrf.mxu0
  %v2052 = vpop.f32.mrf.mxu0
  %v2053 = vadd.f32 0.0, %v2052
  %v2054 = vpop.f32.mrf.mxu0
  %2055 = vmatprep.mubr.bf16.mxu0 %v1807
  %2056 = vmatmul.mubr.bf16.gmra.mxu0 %v1806
  %v2057 = vpop.f32.mrf.mxu0
  %v2058 = vadd.f32 0.0, %v2057
  %v2059 = vpop.f32.mrf.mxu0
  %v2060 = vpop.f32.mrf.mxu0
  %v2061 = vadd.f32 0.0, %v2060
  %v2062 = vpop.f32.mrf.mxu0
  %2063 = vmatprep.mubr.bf16.mxu0 %v1810
  %2064 = vmatmul.mubr.bf16.gmra.mxu0 %v1809
  %v2065 = vpop.f32.mrf.mxu0
  %v2066 = vadd.f32 0.0, %v2065
  %v2067 = vpop.f32.mrf.mxu0
  %v2068 = vpop.f32.mrf.mxu0
  %v2069 = vadd.f32 0.0, %v2068
  %v2070 = vpop.f32.mrf.mxu0
  %2071 = vmatprep.mubr.bf16.mxu0 %v1813
  %2072 = vmatmul.mubr.bf16.gmra.mxu0 %v1812
  %v2073 = vpop.f32.mrf.mxu0
  %v2074 = vadd.f32 0.0, %v2073
  %v2075 = vpop.f32.mrf.mxu0
  %v2076 = vpop.f32.mrf.mxu0
  %v2077 = vadd.f32 0.0, %v2076
  %v2078 = vpop.f32.mrf.mxu0
  %2079 = vdwg.mxu0
  %2080 = vmatprep.subr.bf16.mxu0 0
  %2081 = vmatpush1.bf16.msra.mxu0 0
  %2082 = vmatprep.subr.bf16.mxu0 0
  %2083 = vmatpush1.bf16.msra.mxu0 0
  %2084 = vmatprep.subr.bf16.mxu0 0
  %2085 = vmatpush1.bf16.msra.mxu0 0
  %2086 = vmatprep.subr.bf16.mxu0 0
  %2087 = vmatpush1.bf16.msra.mxu0 0
  %2088 = vmatprep.subr.bf16.mxu0 0
  %2089 = vmatpush1.bf16.msra.mxu0 0
  %2090 = vmatprep.subr.bf16.mxu0 0
  %2091 = vmatpush1.bf16.msra.mxu0 0
  %2092 = vmatprep.subr.bf16.mxu0 0
  %2093 = vmatpush1.bf16.msra.mxu0 %v1940
  %2094 = vmatprep.subr.bf16.mxu0 0
  %2095 = vmatpush1.bf16.msra.mxu0 %v1939
  %2096 = vmatprep.subr.bf16.mxu0 0
  %2097 = vmatpush2.bf16.msra.mxu0 0
  %2098 = vmatprep.subr.bf16.mxu0 0
  %2099 = vmatpush2.bf16.msra.mxu0 0
  %2100 = vmatprep.subr.bf16.mxu0 0
  %2101 = vmatpush2.bf16.msra.mxu0 0
  %2102 = vmatprep.subr.bf16.mxu0 0
  %2103 = vmatpush2.bf16.msra.mxu0 0
  %2104 = vmatprep.subr.bf16.mxu0 0
  %2105 = vmatpush2.bf16.msra.mxu0 0
  %2106 = vmatprep.subr.bf16.mxu0 0
  %2107 = vmatpush2.bf16.msra.mxu0 0
  %2108 = vmatprep.subr.bf16.mxu0 0
  %2109 = vmatpush2.bf16.msra.mxu0 0
  %2110 = vmatprep.subr.bf16.mxu0 0
  %2111 = vmatpush2.bf16.msra.mxu0 0
  %2112 = vmatprep.mubr.bf16.mxu0 0
  %2113 = vmatmul.mubr.bf16.gmra.mxu0 %v1960
  %v2114 = vpop.f32.mrf.mxu0
  %v2115 = vadd.f32 %v2018, %v2114
  %v2116 = vpop.f32.mrf.mxu0
  %v2117 = vpop.f32.mrf.mxu0
  %v2118 = vadd.f32 %v2021, %v2117
  %v2119 = vpop.f32.mrf.mxu0
  %2120 = vmatprep.mubr.bf16.mxu0 0
  %2121 = vmatmul.mubr.bf16.gmra.mxu0 %v1963
  %v2122 = vpop.f32.mrf.mxu0
  %v2123 = vadd.f32 %v2026, %v2122
  %v2124 = vpop.f32.mrf.mxu0
  %v2125 = vpop.f32.mrf.mxu0
  %v2126 = vadd.f32 %v2029, %v2125
  %v2127 = vpop.f32.mrf.mxu0
  %2128 = vmatprep.mubr.bf16.mxu0 0
  %2129 = vmatmul.mubr.bf16.gmra.mxu0 %v1966
  %v2130 = vpop.f32.mrf.mxu0
  %v2131 = vadd.f32 %v2034, %v2130
  %v2132 = vpop.f32.mrf.mxu0
  %v2133 = vpop.f32.mrf.mxu0
  %v2134 = vadd.f32 %v2037, %v2133
  %v2135 = vpop.f32.mrf.mxu0
  %2136 = vmatprep.mubr.bf16.mxu0 0
  %2137 = vmatmul.mubr.bf16.gmra.mxu0 %v1969
  %v2138 = vpop.f32.mrf.mxu0
  %v2139 = vadd.f32 %v2042, %v2138
  %v2140 = vpop.f32.mrf.mxu0
  %v2141 = vpop.f32.mrf.mxu0
  %v2142 = vadd.f32 %v2045, %v2141
  %v2143 = vpop.f32.mrf.mxu0
  %2144 = vmatprep.mubr.bf16.mxu0 0
  %2145 = vmatmul.mubr.bf16.gmra.mxu0 %v1972
  %v2146 = vpop.f32.mrf.mxu0
  %v2147 = vadd.f32 %v2050, %v2146
  %v2148 = vpop.f32.mrf.mxu0
  %v2149 = vpop.f32.mrf.mxu0
  %v2150 = vadd.f32 %v2053, %v2149
  %v2151 = vpop.f32.mrf.mxu0
  %2152 = vmatprep.mubr.bf16.mxu0 0
  %2153 = vmatmul.mubr.bf16.gmra.mxu0 %v1975
  %v2154 = vpop.f32.mrf.mxu0
  %v2155 = vadd.f32 %v2058, %v2154
  %v2156 = vpop.f32.mrf.mxu0
  %v2157 = vpop.f32.mrf.mxu0
  %v2158 = vadd.f32 %v2061, %v2157
  %v2159 = vpop.f32.mrf.mxu0
  %2160 = vmatprep.mubr.bf16.mxu0 0
  %2161 = vmatmul.mubr.bf16.gmra.mxu0 %v1978
  %v2162 = vpop.f32.mrf.mxu0
  %v2163 = vadd.f32 %v2066, %v2162
  %v2164 = vpop.f32.mrf.mxu0
  %v2165 = vpop.f32.mrf.mxu0
  %v2166 = vadd.f32 %v2069, %v2165
  %v2167 = vpop.f32.mrf.mxu0
  %2168 = vmatprep.mubr.bf16.mxu0 0
  %2169 = vmatmul.mubr.bf16.gmra.mxu0 %v1981
  %v2170 = vpop.f32.mrf.mxu0
  %v2171 = vadd.f32 %v2074, %v2170
  %v2172 = vpop.f32.mrf.mxu0
  %v2173 = vpop.f32.mrf.mxu0
  %v2174 = vadd.f32 %v2077, %v2173
  %v2175 = vpop.f32.mrf.mxu0
  %2176 = vdwg.mxu0
  %v2177 = vld [vmem:[%s5] sm:$0x1]
  %v2178 = vld [vmem:[%s6] sm:$0x1]
  %v2179 = vsel %vm445, %v2115, 0.0
  %v2180 = vsel %vm445, %v2118, 0.0
  %v2181 = vadd.f32 %v2179, %v2180
  %v2182 = vsel %vm445, %v2123, 0.0
  %v2183 = vadd.f32 %v2181, %v2182
  %v2184 = vsel %vm445, %v2126, 0.0
  %v2185 = vadd.f32 %v2183, %v2184
  %v2186 = vsel %vm445, %v2131, 0.0
  %v2187 = vadd.f32 %v2185, %v2186
  %v2188 = vsel %vm445, %v2134, 0.0
  %v2189 = vadd.f32 %v2187, %v2188
  %v2190 = vsel %vm445, %v2139, 0.0
  %v2191 = vadd.f32 %v2189, %v2190
  %v2192 = vsel %vm445, %v2142, 0.0
  %v2193 = vadd.f32 %v2191, %v2192
  %v2194 = vrot.slane %v2193, 4
  %v2195 = vadd.f32 %v2193, %v2194
  %v2196 = vrot.slane %v2195, 2
  %v2197 = vadd.f32 %v2195, %v2196
  %v2198 = vrot.slane %v2197, 1
  %v2199 = vadd.f32 %v2197, %v2198
  %v2200 = vsel %vm445, %v2147, 0.0
  %v2201 = vsel %vm445, %v2150, 0.0
  %v2202 = vadd.f32 %v2200, %v2201
  %v2203 = vsel %vm445, %v2155, 0.0
  %v2204 = vadd.f32 %v2202, %v2203
  %v2205 = vsel %vm445, %v2158, 0.0
  %v2206 = vadd.f32 %v2204, %v2205
  %v2207 = vsel %vm445, %v2163, 0.0
  %v2208 = vadd.f32 %v2206, %v2207
  %v2209 = vsel %vm445, %v2166, 0.0
  %v2210 = vadd.f32 %v2208, %v2209
  %v2211 = vsel %vm445, %v2171, 0.0
  %v2212 = vadd.f32 %v2210, %v2211
  %v2213 = vsel %vm445, %v2174, 0.0
  %v2214 = vadd.f32 %v2212, %v2213
  %v2215 = vrot.slane %v2214, 4
  %v2216 = vadd.f32 %v2214, %v2215
  %v2217 = vrot.slane %v2216, 2
  %v2218 = vadd.f32 %v2216, %v2217
  %v2219 = vrot.slane %v2218, 1
  %v2220 = vadd.f32 %v2218, %v2219
  %v2221 = vmul.f32 %v2115, %v2115
  %v2222 = vmul.f32 %v2118, %v2118
  %v2223 = vmul.f32 %v2123, %v2123
  %v2224 = vmul.f32 %v2126, %v2126
  %v2225 = vmul.f32 %v2131, %v2131
  %v2226 = vmul.f32 %v2134, %v2134
  %v2227 = vmul.f32 %v2139, %v2139
  %v2228 = vmul.f32 %v2142, %v2142
  %v2229 = vmul.f32 %v2147, %v2147
  %v2230 = vmul.f32 %v2150, %v2150
  %v2231 = vmul.f32 %v2155, %v2155
  %v2232 = vmul.f32 %v2158, %v2158
  %v2233 = vmul.f32 %v2163, %v2163
  %v2234 = vmul.f32 %v2166, %v2166
  %v2235 = vmul.f32 %v2171, %v2171
  %v2236 = vmul.f32 %v2174, %v2174
  %v2237 = vsel %vm445, %v2221, 0.0
  %v2238 = vsel %vm445, %v2222, 0.0
  %v2239 = vadd.f32 %v2237, %v2238
  %v2240 = vsel %vm445, %v2223, 0.0
  %v2241 = vadd.f32 %v2239, %v2240
  %v2242 = vsel %vm445, %v2224, 0.0
  %v2243 = vadd.f32 %v2241, %v2242
  %v2244 = vsel %vm445, %v2225, 0.0
  %v2245 = vadd.f32 %v2243, %v2244
  %v2246 = vsel %vm445, %v2226, 0.0
  %v2247 = vadd.f32 %v2245, %v2246
  %v2248 = vsel %vm445, %v2227, 0.0
  %v2249 = vadd.f32 %v2247, %v2248
  %v2250 = vsel %vm445, %v2228, 0.0
  %v2251 = vadd.f32 %v2249, %v2250
  %v2252 = vrot.slane %v2251, 4
  %v2253 = vadd.f32 %v2251, %v2252
  %v2254 = vrot.slane %v2253, 2
  %v2255 = vadd.f32 %v2253, %v2254
  %v2256 = vrot.slane %v2255, 1
  %v2257 = vadd.f32 %v2255, %v2256
  %v2258 = vsel %vm445, %v2229, 0.0
  %v2259 = vsel %vm445, %v2230, 0.0
  %v2260 = vadd.f32 %v2258, %v2259
  %v2261 = vsel %vm445, %v2231, 0.0
  %v2262 = vadd.f32 %v2260, %v2261
  %v2263 = vsel %vm445, %v2232, 0.0
  %v2264 = vadd.f32 %v2262, %v2263
  %v2265 = vsel %vm445, %v2233, 0.0
  %v2266 = vadd.f32 %v2264, %v2265
  %v2267 = vsel %vm445, %v2234, 0.0
  %v2268 = vadd.f32 %v2266, %v2267
  %v2269 = vsel %vm445, %v2235, 0.0
  %v2270 = vadd.f32 %v2268, %v2269
  %v2271 = vsel %vm445, %v2236, 0.0
  %v2272 = vadd.f32 %v2270, %v2271
  %v2273 = vrot.slane %v2272, 4
  %v2274 = vadd.f32 %v2272, %v2273
  %v2275 = vrot.slane %v2274, 2
  %v2276 = vadd.f32 %v2274, %v2275
  %v2277 = vrot.slane %v2276, 1
  %v2278 = vadd.f32 %v2276, %v2277
  %v2281 = vsel %vm432, %v2220, %v2199
  %v2285 = vsel %vm437, %v2278, %v2257
  %v2287 = vsel %vm440, %v2281, %v2285
  %v2289 = vsel %vm445, %v2287, 0
  %2291 = vmatprep.subr.mxu0 0.0
  %2292 = vmatpush1.msra.mxu0 0.0
  %2293 = vmatprep.subr.mxu0 0.0
  %2294 = vmatpush1.msra.mxu0 0.0
  %2295 = vmatprep.subr.mxu0 0.0
  %2296 = vmatpush1.msra.mxu0 0.0
  %2297 = vmatprep.subr.mxu0 0.0
  %2298 = vmatpush1.msra.mxu0 0.0
  %2299 = vmatprep.subr.mxu0 0.0
  %2300 = vmatpush1.msra.mxu0 0.0
  %2301 = vmatprep.subr.mxu0 0.0
  %2302 = vmatpush1.msra.mxu0 0.0
  %2303 = vmatprep.subr.mxu0 0.0
  %2304 = vmatpush1.msra.mxu0 0.0
  %2305 = vmatprep.subr.mxu0 0.0
  %2306 = vmatpush1.msra.mxu0 0.0
  %2307 = vmatprep.subr.mxu0 0.0
  %2308 = vmatpush1.msra.mxu0 0.0
  %2309 = vmatprep.subr.mxu0 0.0
  %2310 = vmatpush1.msra.mxu0 0.0
  %2311 = vmatprep.subr.mxu0 0.0
  %2312 = vmatpush1.msra.mxu0 0.0
  %2313 = vmatprep.subr.mxu0 0.0
  %2314 = vmatpush1.msra.mxu0 0.0
  %2315 = vmatprep.subr.mxu0 0.0
  %2316 = vmatpush1.msra.mxu0 %v42
  %2317 = vmatprep.subr.mxu0 0.0
  %2318 = vmatpush1.msra.mxu0 %v41
  %2319 = vmatprep.subr.mxu0 0.0
  %2320 = vmatpush1.msra.mxu0 %v40
  %2321 = vmatprep.subr.mxu0 0.0
  %2322 = vmatpush1.msra.mxu0 %v39
  %2323 = vmatprep.subr.mxu0 0.0
  %2324 = vmatpush2.msra.mxu0 0.0
  %2325 = vmatprep.subr.mxu0 0.0
  %2326 = vmatpush2.msra.mxu0 0.0
  %2327 = vmatprep.subr.mxu0 0.0
  %2328 = vmatpush2.msra.mxu0 0.0
  %2329 = vmatprep.subr.mxu0 0.0
  %2330 = vmatpush2.msra.mxu0 0.0
  %2331 = vmatprep.subr.mxu0 0.0
  %2332 = vmatpush2.msra.mxu0 0.0
  %2333 = vmatprep.subr.mxu0 0.0
  %2334 = vmatpush2.msra.mxu0 0.0
  %2335 = vmatprep.subr.mxu0 0.0
  %2336 = vmatpush2.msra.mxu0 0.0
  %2337 = vmatprep.subr.mxu0 0.0
  %2338 = vmatpush2.msra.mxu0 0.0
  %2339 = vmatprep.subr.mxu0 0.0
  %2340 = vmatpush2.msra.mxu0 0.0
  %2341 = vmatprep.subr.mxu0 0.0
  %2342 = vmatpush2.msra.mxu0 0.0
  %2343 = vmatprep.subr.mxu0 0.0
  %2344 = vmatpush2.msra.mxu0 0.0
  %2345 = vmatprep.subr.mxu0 0.0
  %2346 = vmatpush2.msra.mxu0 0.0
  %2347 = vmatprep.subr.mxu0 0.0
  %2348 = vmatpush2.msra.mxu0 0.0
  %2349 = vmatprep.subr.mxu0 0.0
  %2350 = vmatpush2.msra.mxu0 0.0
  %2351 = vmatprep.subr.mxu0 0.0
  %2352 = vmatpush2.msra.mxu0 0.0
  %2353 = vmatprep.subr.mxu0 0.0
  %2354 = vmatpush2.msra.mxu0 0.0
  %2355 = vmatprep.mubr.f32.mxu0 0.0
  %2356 = vmatmul.mubr.f32.gmra.mxu0 %v2289
  %v2357 = vpop.f32.mrf.mxu0
  %v2358 = vadd.f32 0.0, %v2357
  %v2359 = vpop.f32.mrf.mxu0
  %2360 = vdwg.mxu0
  %v2361 = vmul.f32 %v2358, %v2358
  %v2363 = vrot.slane %v2361, 6
  %v2365 = vsub.f32 %v2358, %v2363
  %v2366 = vadd.f32 %v2365, 1e-05
  %v2367 = vrsqrt.pop %v2366
  %v2368 = vsel %vm440, %v2358, %v2367
  %v2370 = vsel %vm205, %v2368, 0
  %2372 = vmatprep.subr.mxu0 0.0
  %2373 = vmatpush1.msra.mxu0 0.0
  %2374 = vmatprep.subr.mxu0 0.0
  %2375 = vmatpush1.msra.mxu0 0.0
  %2376 = vmatprep.subr.mxu0 0.0
  %2377 = vmatpush1.msra.mxu0 0.0
  %2378 = vmatprep.subr.mxu0 0.0
  %2379 = vmatpush1.msra.mxu0 0.0
  %2380 = vmatprep.subr.mxu0 0.0
  %2381 = vmatpush1.msra.mxu0 0.0
  %2382 = vmatprep.subr.mxu0 0.0
  %2383 = vmatpush1.msra.mxu0 0.0
  %2384 = vmatprep.subr.mxu0 0.0
  %2385 = vmatpush1.msra.mxu0 0.0
  %2386 = vmatprep.subr.mxu0 0.0
  %2387 = vmatpush1.msra.mxu0 0.0
  %2388 = vmatprep.subr.mxu0 0.0
  %2389 = vmatpush1.msra.mxu0 0.0
  %2390 = vmatprep.subr.mxu0 0.0
  %2391 = vmatpush1.msra.mxu0 0.0
  %2392 = vmatprep.subr.mxu0 0.0
  %2393 = vmatpush1.msra.mxu0 0.0
  %2394 = vmatprep.subr.mxu0 0.0
  %2395 = vmatpush1.msra.mxu0 0.0
  %2396 = vmatprep.subr.mxu0 0.0
  %2397 = vmatpush1.msra.mxu0 0.0
  %2398 = vmatprep.subr.mxu0 0.0
  %2399 = vmatpush1.msra.mxu0 0.0
  %2400 = vmatprep.subr.mxu0 0.0
  %2401 = vmatpush1.msra.mxu0 %v44
  %2402 = vmatprep.subr.mxu0 0.0
  %2403 = vmatpush1.msra.mxu0 %v43
  %2404 = vmatprep.subr.mxu0 0.0
  %2405 = vmatpush2.msra.mxu0 0.0
  %2406 = vmatprep.subr.mxu0 0.0
  %2407 = vmatpush2.msra.mxu0 0.0
  %2408 = vmatprep.subr.mxu0 0.0
  %2409 = vmatpush2.msra.mxu0 0.0
  %2410 = vmatprep.subr.mxu0 0.0
  %2411 = vmatpush2.msra.mxu0 0.0
  %2412 = vmatprep.subr.mxu0 0.0
  %2413 = vmatpush2.msra.mxu0 0.0
  %2414 = vmatprep.subr.mxu0 0.0
  %2415 = vmatpush2.msra.mxu0 0.0
  %2416 = vmatprep.subr.mxu0 0.0
  %2417 = vmatpush2.msra.mxu0 0.0
  %2418 = vmatprep.subr.mxu0 0.0
  %2419 = vmatpush2.msra.mxu0 0.0
  %2420 = vmatprep.subr.mxu0 0.0
  %2421 = vmatpush2.msra.mxu0 0.0
  %2422 = vmatprep.subr.mxu0 0.0
  %2423 = vmatpush2.msra.mxu0 0.0
  %2424 = vmatprep.subr.mxu0 0.0
  %2425 = vmatpush2.msra.mxu0 0.0
  %2426 = vmatprep.subr.mxu0 0.0
  %2427 = vmatpush2.msra.mxu0 0.0
  %2428 = vmatprep.subr.mxu0 0.0
  %2429 = vmatpush2.msra.mxu0 0.0
  %2430 = vmatprep.subr.mxu0 0.0
  %2431 = vmatpush2.msra.mxu0 0.0
  %2432 = vmatprep.subr.mxu0 0.0
  %2433 = vmatpush2.msra.mxu0 0.0
  %2434 = vmatprep.subr.mxu0 0.0
  %2435 = vmatpush2.msra.mxu0 0.0
  %2436 = vmatprep.mubr.f32.mxu0 0.0
  %2437 = vmatmul.mubr.f32.gmra.mxu0 %v2370
  %v2438 = vpop.f32.mrf.mxu0
  %v2439 = vadd.f32 0.0, %v2438
  %v2440 = vpop.f32.mrf.mxu0
  %2441 = vdwg.mxu0
  %v2443 = vlaneseq
  %v2444 = vshrl.u32 %v2443, 7
  %v2445 = vsub.s32 0, %v2444
  %v2446 = vrot.slane %v2177, %v2445
  %v2448 = vmul.f32 %v2439, %v2446
  %v2450 = vrot.slane %v2448, 2
  %v2452 = vmul.f32 %v2439, %v2450
  %v2454 = vlaneseq
  %v2455 = vshrl.u32 %v2454, 7
  %v2456 = vsub.s32 0, %v2455
  %v2457 = vrot.slane %v2178, %v2456
  %v2459 = vsub.f32 %v2457, %v2452
  %v2461 = vunpack.c.l.s4 1966171168
  %v2462 = vunpack.c.0.s8 %v2461
  %v2463 = vlaneseq
  %v2464 = vshrl.u32 %v2463, 7
  %v2465 = vsub.s32 %v2462, %v2464
  %v2466 = vrot.slane %v2448, %v2465
  %v2467 = vcombine.high %v2466, %v2466
  %v2469 = vunpack.c.l.s4 1966171168
  %v2470 = vunpack.c.0.s8 %v2469
  %v2471 = vlaneseq
  %v2472 = vshrl.u32 %v2471, 7
  %v2473 = vsub.s32 %v2470, %v2472
  %v2474 = vrot.slane %v2466, %v2473
  %v2476 = vunpack.c.l.s4 1966171168
  %v2477 = vunpack.c.0.s8 %v2476
  %v2478 = vlaneseq
  %v2479 = vshrl.u32 %v2478, 7
  %v2480 = vsub.s32 %v2477, %v2479
  %v2481 = vrot.slane %v2467, %v2480
  %v2482 = vcombine.high %v2474, %v2474
  %v2483 = vcombine.high %v2481, %v2481
  %v2484 = vlaneseq
  %v2485 = vshrl.u32 %v2484, 7
  %v2486 = vsub.s32 0, %v2485
  %v2487 = vrot.slane %v2482, %v2486
  %v2488 = vlaneseq
  %v2489 = vshrl.u32 %v2488, 7
  %v2490 = vsub.s32 0, %v2489
  %v2491 = vrot.slane %v2483, %v2490
  %v2494 = vmul.f32 %v2115, %v2487
  %v2495 = vmul.f32 %v2118, %v2487
  %v2496 = vmul.f32 %v2123, %v2487
  %v2497 = vmul.f32 %v2126, %v2487
  %v2498 = vmul.f32 %v2131, %v2487
  %v2499 = vmul.f32 %v2134, %v2487
  %v2500 = vmul.f32 %v2139, %v2487
  %v2501 = vmul.f32 %v2142, %v2487
  %v2502 = vmul.f32 %v2147, %v2491
  %v2503 = vmul.f32 %v2150, %v2491
  %v2504 = vmul.f32 %v2155, %v2491
  %v2505 = vmul.f32 %v2158, %v2491
  %v2506 = vmul.f32 %v2163, %v2491
  %v2507 = vmul.f32 %v2166, %v2491
  %v2508 = vmul.f32 %v2171, %v2491
  %v2509 = vmul.f32 %v2174, %v2491
  %v2512 = vunpack.c.l.s4 1966171168
  %v2513 = vunpack.c.0.s8 %v2512
  %v2514 = vlaneseq
  %v2515 = vshrl.u32 %v2514, 7
  %v2516 = vsub.s32 %v2513, %v2515
  %v2517 = vrot.slane %v2459, %v2516
  %v2518 = vcombine.high %v2517, %v2517
  %v2520 = vunpack.c.l.s4 1966171168
  %v2521 = vunpack.c.0.s8 %v2520
  %v2522 = vlaneseq
  %v2523 = vshrl.u32 %v2522, 7
  %v2524 = vsub.s32 %v2521, %v2523
  %v2525 = vrot.slane %v2517, %v2524
  %v2527 = vunpack.c.l.s4 1966171168
  %v2528 = vunpack.c.0.s8 %v2527
  %v2529 = vlaneseq
  %v2530 = vshrl.u32 %v2529, 7
  %v2531 = vsub.s32 %v2528, %v2530
  %v2532 = vrot.slane %v2518, %v2531
  %v2533 = vlaneseq
  %v2534 = vshrl.u32 %v2533, 7
  %v2535 = vsub.s32 0, %v2534
  %v2536 = vrot.slane %v2525, %v2535
  %v2537 = vlaneseq
  %v2538 = vshrl.u32 %v2537, 7
  %v2539 = vsub.s32 0, %v2538
  %v2540 = vrot.slane %v2532, %v2539
  %v2543 = vadd.f32 %v2494, %v2536
  %v2544 = vadd.f32 %v2495, %v2536
  %v2545 = vadd.f32 %v2496, %v2536
  %v2546 = vadd.f32 %v2497, %v2536
  %v2547 = vadd.f32 %v2498, %v2536
  %v2548 = vadd.f32 %v2499, %v2536
  %v2549 = vadd.f32 %v2500, %v2536
  %v2550 = vadd.f32 %v2501, %v2536
  %v2551 = vadd.f32 %v2502, %v2540
  %v2552 = vadd.f32 %v2503, %v2540
  %v2553 = vadd.f32 %v2504, %v2540
  %v2554 = vadd.f32 %v2505, %v2540
  %v2555 = vadd.f32 %v2506, %v2540
  %v2556 = vadd.f32 %v2507, %v2540
  %v2557 = vadd.f32 %v2508, %v2540
  %v2558 = vadd.f32 %v2509, %v2540
  %2575 = vrot.lane.b32.xlu0 %v708, 96
  %v2576 = vpop.permute.xlu0 %2575
  %2577 = vrot.lane.b32.xlu0 %v709, 96
  %v2578 = vpop.permute.xlu0 %2577
  %2579 = vrot.lane.b32.xlu0 %v710, 96
  %v2580 = vpop.permute.xlu0 %2579
  %2581 = vrot.lane.b32.xlu0 %v711, 96
  %v2582 = vpop.permute.xlu0 %2581
  %2583 = vrot.lane.b32.xlu0 %v712, 96
  %v2584 = vpop.permute.xlu0 %2583
  %2585 = vrot.lane.b32.xlu0 %v713, 96
  %v2586 = vpop.permute.xlu0 %2585
  %2587 = vrot.lane.b32.xlu0 %v714, 96
  %v2588 = vpop.permute.xlu0 %2587
  %2589 = vrot.lane.b32.xlu0 %v715, 96
  %v2590 = vpop.permute.xlu0 %2589
  %2591 = vrot.lane.b32.xlu0 %v716, 96
  %v2592 = vpop.permute.xlu0 %2591
  %2593 = vrot.lane.b32.xlu0 %v717, 96
  %v2594 = vpop.permute.xlu0 %2593
  %2595 = vrot.lane.b32.xlu0 %v718, 96
  %v2596 = vpop.permute.xlu0 %2595
  %2597 = vrot.lane.b32.xlu0 %v719, 96
  %v2598 = vpop.permute.xlu0 %2597
  %2599 = vrot.lane.b32.xlu0 %v720, 96
  %v2600 = vpop.permute.xlu0 %2599
  %2601 = vrot.lane.b32.xlu0 %v721, 96
  %v2602 = vpop.permute.xlu0 %2601
  %2603 = vrot.lane.b32.xlu0 %v722, 96
  %v2604 = vpop.permute.xlu0 %2603
  %2605 = vrot.lane.b32.xlu0 %v723, 96
  %v2606 = vpop.permute.xlu0 %2605
  %v2623 = vadd.f32 %v2543, %v2576
  %v2624 = vadd.f32 %v2544, %v2578
  %v2625 = vadd.f32 %v2545, %v2580
  %v2626 = vadd.f32 %v2546, %v2582
  %v2627 = vadd.f32 %v2547, %v2584
  %v2628 = vadd.f32 %v2548, %v2586
  %v2629 = vadd.f32 %v2549, %v2588
  %v2630 = vadd.f32 %v2550, %v2590
  %v2631 = vadd.f32 %v2551, %v2592
  %v2632 = vadd.f32 %v2552, %v2594
  %v2633 = vadd.f32 %v2553, %v2596
  %v2634 = vadd.f32 %v2554, %v2598
  %v2635 = vadd.f32 %v2555, %v2600
  %v2636 = vadd.f32 %v2556, %v2602
  %v2637 = vadd.f32 %v2557, %v2604
  %v2638 = vadd.f32 %v2558, %v2606
  %v2639 = vmax.f32 %v2623, 0.0
  %v2640 = vmax.f32 %v2624, 0.0
  %v2641 = vmax.f32 %v2625, 0.0
  %v2642 = vmax.f32 %v2626, 0.0
  %v2643 = vmax.f32 %v2627, 0.0
  %v2644 = vmax.f32 %v2628, 0.0
  %v2645 = vmax.f32 %v2629, 0.0
  %v2646 = vmax.f32 %v2630, 0.0
  %v2647 = vmax.f32 %v2631, 0.0
  %v2648 = vmax.f32 %v2632, 0.0
  %v2649 = vmax.f32 %v2633, 0.0
  %v2650 = vmax.f32 %v2634, 0.0
  %v2651 = vmax.f32 %v2635, 0.0
  %v2652 = vmax.f32 %v2636, 0.0
  %v2653 = vmax.f32 %v2637, 0.0
  %v2654 = vmax.f32 %v2638, 0.0
  %2655 = vst.msk [vmem:[%s11] sm:$0xff] %vm445, %v2639
  %2656 = vst.msk [vmem:[%s11 + $0x8] sm:$0xff] %vm445, %v2640
  %2657 = vst.msk [vmem:[%s11 + $0x10] sm:$0xff] %vm445, %v2641
  %2658 = vst.msk [vmem:[%s11 + $0x18] sm:$0xff] %vm445, %v2642
  %2659 = vst.msk [vmem:[%s11 + $0x20] sm:$0xff] %vm445, %v2643
  %2660 = vst.msk [vmem:[%s11 + $0x28] sm:$0xff] %vm445, %v2644
  %2661 = vst.msk [vmem:[%s11 + $0x30] sm:$0xff] %vm445, %v2645
  %2662 = vst.msk [vmem:[%s11 + $0x38] sm:$0xff] %vm445, %v2646
  %2663 = vst.msk [vmem:[%s11 + $0x40] sm:$0xff] %vm445, %v2647
  %2664 = vst.msk [vmem:[%s11 + $0x48] sm:$0xff] %vm445, %v2648
  %2665 = vst.msk [vmem:[%s11 + $0x50] sm:$0xff] %vm445, %v2649
  %2666 = vst.msk [vmem:[%s11 + $0x58] sm:$0xff] %vm445, %v2650
  %2667 = vst.msk [vmem:[%s11 + $0x60] sm:$0xff] %vm445, %v2651
  %2668 = vst.msk [vmem:[%s11 + $0x68] sm:$0xff] %vm445, %v2652
  %2669 = vst.msk [vmem:[%s11 + $0x70] sm:$0xff] %vm445, %v2653
  %2670 = vst.msk [vmem:[%s11 + $0x78] sm:$0xff] %vm445, %v2654
  // Predicated region
  $region46: #{tpu_custom_call.1} parent=0 // pred_check
    _
  $region47: #{tpu_custom_call.1} parent=0 // pred_check_branch
    %2672 = sbr.rel (0) target = $region49
  $region48: #{tpu_custom_call.1} parent=0 // pred_region
    _
  $region49: #{tpu_custom_call.1} parent=0 // pred_fallthru
    _
  // Predicated region
  $region50: #{tpu_custom_call.1} parent=0 // pred_check
    _
  $region51: #{tpu_custom_call.1} parent=0 // pred_check_branch
    %2674 = sbr.rel (0) target = $region53
  $region52: #{tpu_custom_call.1} parent=0 // pred_region
    _
  $region53: #{tpu_custom_call.1} parent=0 // pred_fallthru
    _

</llo_original>
